<compile_context>
chip_gen: v6e
topology: v6e:2x2x1
jax: 0.10.0
libtpu: 0.0.40
codegen_flags: <defaults>
</compile_context>

<pallas_src>
import functools
import math

import jax
import jax.numpy as jnp
import numpy as np
from jax.experimental import pallas as pl
from jax.experimental.pallas import tpu as pltpu


def mqa_kernel(x_ref, wqkv_ref, wok_ref, o_ref, *, H, W, key_dim, value_dim):
    """Fused MQA forward over the whole batch.

    x_ref   : (B, H*W, C)                      spatial-major input
    wqkv_ref: (C, 2*key_dim + value_dim)       fused [wq | wk | wv] (folded 1x1 convs)
    wok_ref : (value_dim*W*value_dim, C*W*value_dim)  kron(W3^T, I_{W*vd})
    o_ref   : (B, C*W*value_dim)               lane-dense output rows
    """
    HW = H * W
    B = x_ref.shape[0]
    C = x_ref.shape[2]

    # --- fused QKV projection: ONE MXU matmul, batch folded into the rows ---
    x2 = x_ref[...].reshape(B * HW, C)
    qkv = jnp.dot(x2, wqkv_ref[...], preferred_element_type=jnp.float32)
    qkv = qkv.reshape(B, HW, 2 * key_dim + value_dim)
    qT = qkv[:, :, :key_dim]                    # (B, HW, kd)  spatial-major q
    kT = qkv[:, :, key_dim:2 * key_dim]         # (B, HW, kd)
    vT = qkv[:, :, 2 * key_dim:]                # (B, HW, vd)

    # --- logits: Q.K^T-style batched contraction on the trailing feature dim -
    logits = jnp.einsum('blk,bpk->blp', qT, kT,
                        preferred_element_type=jnp.float32)   # (B, lh, p)
    logits = logits * (1.0 / math.sqrt(key_dim))

    # --- grouped softmax over the W-sized h groups of the lh axis ------------
    # torch softmax(dim=-1) == softmax over h for every (b, p, l); dropout p=0
    # is identity.  Group max/sum on the (B, H, W, HW) view + EUP reciprocal.
    l4 = logits.reshape(B, H, W, HW)
    e4 = jnp.exp(l4 - jnp.max(l4, axis=2, keepdims=True))
    d4 = jnp.sum(e4, axis=2, keepdims=True)
    attnT = (e4 * pl.reciprocal(d4, approx=True)).reshape(B, HW, HW)  # (B, lh, p)

    # --- attention * V: standard batched matmul ------------------------------
    out_e = jnp.einsum('blp,bpv->blv', attnT, vT,
                       preferred_element_type=jnp.float32)    # (B, HW, vd)

    # --- layer3 + trailing torch reshapes: ONE 2-D matmul ---------------------
    # out_e flattened per batch is exactly the (l, m)-ordered row expected by
    # kron(W3^T, I_{W*vd}); the matmul emits the lane-dense (B, C*W*vd) slab
    # directly (no broadcast weight, no trailing relayout).
    t_flat = out_e.reshape(B, HW * value_dim)
    o_ref[...] = jnp.dot(t_flat, wok_ref[...],
                         preferred_element_type=jnp.float32)


def mqa_forward(x, W0, W1, W2, W3, *, num_heads, key_dim, value_dim,
                dropout=0.0, query_h_strides=1, query_w_strides=1,
                kv_strides=1):
    B, C, H, W = x.shape
    HW = H * W
    # Guard the assumptions under which this kernel matches the reference.
    assert query_h_strides == 1 and query_w_strides == 1 and kv_strides == 1, (
        "kernel implements the all-strides-1 path (no AvgPool/BatchNorm/"
        "Upsample/dw-conv branches)")
    assert dropout == 0.0, "dropout must be 0 (treated as identity)"
    assert num_heads == 1 and key_dim == HW and value_dim == H and C == HW, (
        "the reference forward only runs with num_heads==1, key_dim==H*W, "
        "in_channels==H*W, value_dim==H")

    wvd = W * value_dim
    out_cols = C * wvd

    f32 = jnp.float32
    x = x.astype(f32)
    W0 = W0.astype(f32)
    W1 = W1.astype(f32)
    W2 = W2.astype(f32)
    W3 = W3.astype(f32)

    # Spatial-major input so every in-kernel contraction is transpose-free.
    # TODO(synk): at production sizes fuse this transpose into the upstream
    # producer (it is an extra XLA op with a full HBM read+write of the
    # activations); at this toy size it is noise.
    x_sm = jnp.transpose(x.reshape(B, C, HW), (0, 2, 1))      # (B, HW, C)

    # Fold the 1x1-conv compositions once on the host (tiny matrices) and fuse
    # the three projection weights into a single matrix.
    hi = jax.lax.Precision.HIGHEST
    wq = W0.T                                                 # (C, kd)
    wk = jnp.dot(W1, W0, precision=hi).T                      # (C, kd)
    wv = jnp.dot(W2, W0, precision=hi).T                      # (C, vd)
    wqkv = jnp.concatenate([wq, wk, wv], axis=1)              # (C, 2kd+vd)

    # layer3 + trailing reshapes as one matrix: kron(W3^T, I_{W*vd}).
    wo_kron = jnp.kron(W3.T, jnp.eye(wvd, dtype=f32))         # (vd*wvd, C*wvd)

    kernel = functools.partial(mqa_kernel, H=H, W=W,
                               key_dim=key_dim, value_dim=value_dim)

    out = pl.pallas_call(
        kernel,
        out_shape=jax.ShapeDtypeStruct((B, out_cols), f32),
        in_specs=[pl.BlockSpec(memory_space=pltpu.MemorySpace.VMEM)] * 3,
        out_specs=pl.BlockSpec(memory_space=pltpu.MemorySpace.VMEM),
    )(x_sm, wqkv, wo_kron)

    # plain-JAX layout plumbing back to the PyTorch output shape
    # (B, H*W, num_heads, key_dim).
    return out.reshape(B, HW, num_heads, key_dim)


def reference_forward(x, W0, W1, W2, W3, *, num_heads, key_dim, value_dim):
    """Pure-JAX mirror of the PyTorch forward (for verification)."""
    B, C, H, W = x.shape
    q = jnp.einsum('oc,bchw->bohw', W0, x)                    # layer0
    x2 = q.reshape(B, H * W, num_heads, key_dim)
    k = jnp.einsum('oc,bcij->boij', W1, x2)                   # layer1
    k = k.reshape(B, k.shape[1], -1)
    logits = jnp.einsum('bklh,bkp->bplh', q, k) / math.sqrt(key_dim)
    attn = jax.nn.softmax(logits, axis=-1)                    # dropout p=0 -> id
    v = jnp.einsum('oc,bcij->boij', W2, x2)                   # layer2
    v = v.reshape(B, v.shape[1], -1)
    out = jnp.einsum('bplh,bkp->blhk', attn, v)
    out = out.reshape(B, out.shape[1], H, W)
    out = jnp.einsum('oc,bchw->bohw', W3, out)                # layer3
    return out.reshape(x2.shape)


def _run_case(case_key, B, H, W):
    num_heads = 1
    key_dim = H * W
    value_dim = H
    in_channels = H * W

    kx, k0, k1, k2, k3 = jax.random.split(case_key, 5)
    x = jax.random.normal(kx, (B, in_channels, H, W), dtype=jnp.float32)
    W0 = 0.1 * jax.random.normal(k0, (num_heads * key_dim, in_channels), jnp.float32)
    W1 = 0.1 * jax.random.normal(k1, (key_dim, num_heads * key_dim), jnp.float32)
    W2 = 0.1 * jax.random.normal(k2, (value_dim, key_dim), jnp.float32)
    W3 = 0.1 * jax.random.normal(k3, (in_channels, value_dim), jnp.float32)

    out = mqa_forward(x, W0, W1, W2, W3, num_heads=num_heads,
                      key_dim=key_dim, value_dim=value_dim)
    out = jax.block_until_ready(out)

    ref = reference_forward(x, W0, W1, W2, W3, num_heads=num_heads,
                            key_dim=key_dim, value_dim=value_dim)
    ref = jax.block_until_ready(ref)

    # approx=True reciprocal in the softmax -> slightly relaxed tolerances.
    np.testing.assert_allclose(np.asarray(out), np.asarray(ref),
                               rtol=2e-3, atol=2e-4)


if __name__ == "__main__":
    root = jax.random.PRNGKey(0)
    key_a, key_b = jax.random.split(root, 2)
    # Square case: B=8 gives a full 8-sublane, 256-lane output tile.
    _run_case(key_a, B=8, H=4, W=4)
    # Non-square case (H != W) protects the grouped-softmax axis choice.
    _run_case(key_b, B=4, H=2, W=4)
    print("KERNEL_OK")
</pallas_src>

<mosaic_0001>
module attributes {stable_mosaic.version = 11 : i64} {
  func.func @mqa_kernel(%arg0: memref<8x16x16xf32, #tpu.memory_space<vmem>>, %arg1: memref<16x36xf32, #tpu.memory_space<vmem>>, %arg2: memref<64x256xf32, #tpu.memory_space<vmem>>, %arg3: memref<8x256xf32, #tpu.memory_space<vmem>>) attributes {dimension_semantics = [], scalar_prefetch = 0 : i64, scratch_operands = 0 : i64, tpu.core_type = #tpu.core_type<tc>} {
    %c0 = arith.constant 0 : index
    %c0_0 = arith.constant 0 : index
    %c0_1 = arith.constant 0 : index
    %0 = vector.load %arg0[%c0, %c0_0, %c0_1] : memref<8x16x16xf32, #tpu.memory_space<vmem>>, vector<8x16x16xf32>
    %1 = vector.shape_cast %0 : vector<8x16x16xf32> to vector<128x16xf32>
    %c0_2 = arith.constant 0 : index
    %c0_3 = arith.constant 0 : index
    %2 = vector.load %arg1[%c0_2, %c0_3] : memref<16x36xf32, #tpu.memory_space<vmem>>, vector<16x36xf32>
    %cst = arith.constant dense<0.000000e+00> : vector<128x36xf32>
    %3 = tpu.matmul %1, %2, %cst {dimension_numbers = #tpu.dot_dimension_numbers<[1], [0], [0], [1], [0, 0, 1, 1], [], []>} : vector<128x16xf32>, vector<16x36xf32>, vector<128x36xf32> -> vector<128x36xf32>
    %4 = vector.shape_cast %3 : vector<128x36xf32> to vector<8x16x36xf32>
    %5 = vector.extract_strided_slice %4 {offsets = [0, 0, 0], sizes = [8, 16, 16], strides = [1, 1, 1]} : vector<8x16x36xf32> to vector<8x16x16xf32>
    %6 = vector.extract_strided_slice %4 {offsets = [0, 0, 16], sizes = [8, 16, 16], strides = [1, 1, 1]} : vector<8x16x36xf32> to vector<8x16x16xf32>
    %7 = vector.extract_strided_slice %4 {offsets = [0, 0, 32], sizes = [8, 16, 4], strides = [1, 1, 1]} : vector<8x16x36xf32> to vector<8x16x4xf32>
    "tpu.trace_start"() <{level = 10 : i32, message = "blk,bpk->blp"}> : () -> ()
    %cst_4 = arith.constant dense<0.000000e+00> : vector<8x16x16xf32>
    %8 = tpu.matmul %5, %6, %cst_4 {dimension_numbers = #tpu.dot_dimension_numbers<[2], [2], [1], [1], [0, 0, 0, 1, 1, 1], [0], [0]>} : vector<8x16x16xf32>, vector<8x16x16xf32>, vector<8x16x16xf32> -> vector<8x16x16xf32>
    "tpu.trace_stop"() : () -> ()
    %cst_5 = arith.constant 2.500000e-01 : f32
    %9 = vector.broadcast %cst_5 : f32 to vector<8x16x16xf32>
    %10 = arith.mulf %8, %9 : vector<8x16x16xf32>
    %11 = vector.shape_cast %10 : vector<8x16x16xf32> to vector<8x4x4x16xf32>
    %cst_6 = arith.constant dense<0xFF800000> : vector<8x4x16xf32>
    %12 = vector.multi_reduction <maximumf>, %11, %cst_6 [2] : vector<8x4x4x16xf32> to vector<8x4x16xf32>
    %13 = vector.shape_cast %12 : vector<8x4x16xf32> to vector<8x4x1x16xf32>
    %14 = vector.broadcast %13 : vector<8x4x1x16xf32> to vector<8x4x4x16xf32>
    %15 = arith.subf %11, %14 : vector<8x4x4x16xf32>
    %16 = math.exp %15 : vector<8x4x4x16xf32>
    %cst_7 = arith.constant dense<0.000000e+00> : vector<8x4x16xf32>
    %17 = vector.multi_reduction <add>, %16, %cst_7 [2] : vector<8x4x4x16xf32> to vector<8x4x16xf32>
    %18 = vector.shape_cast %17 : vector<8x4x16xf32> to vector<8x4x1x16xf32>
    %19 = tpu.reciprocal %18 {approx = true} : vector<8x4x1x16xf32> -> vector<8x4x1x16xf32>
    %20 = vector.broadcast %19 : vector<8x4x1x16xf32> to vector<8x4x4x16xf32>
    %21 = arith.mulf %16, %20 : vector<8x4x4x16xf32>
    %22 = vector.shape_cast %21 : vector<8x4x4x16xf32> to vector<8x16x16xf32>
    "tpu.trace_start"() <{level = 10 : i32, message = "blp,bpv->blv"}> : () -> ()
    %cst_8 = arith.constant dense<0.000000e+00> : vector<8x16x4xf32>
    %23 = tpu.matmul %22, %7, %cst_8 {dimension_numbers = #tpu.dot_dimension_numbers<[2], [1], [1], [2], [0, 0, 0, 1, 1, 2], [0], [0]>} : vector<8x16x16xf32>, vector<8x16x4xf32>, vector<8x16x4xf32> -> vector<8x16x4xf32>
    "tpu.trace_stop"() : () -> ()
    %24 = vector.shape_cast %23 : vector<8x16x4xf32> to vector<8x64xf32>
    %c0_9 = arith.constant 0 : index
    %c0_10 = arith.constant 0 : index
    %25 = vector.load %arg2[%c0_9, %c0_10] : memref<64x256xf32, #tpu.memory_space<vmem>>, vector<64x256xf32>
    %cst_11 = arith.constant dense<0.000000e+00> : vector<8x256xf32>
    %26 = tpu.matmul %24, %25, %cst_11 {dimension_numbers = #tpu.dot_dimension_numbers<[1], [0], [0], [1], [0, 0, 1, 1], [], []>} : vector<8x64xf32>, vector<64x256xf32>, vector<8x256xf32> -> vector<8x256xf32>
    %c0_12 = arith.constant 0 : index
    %c0_13 = arith.constant 0 : index
    %27 = vector.load %arg3[%c0_12, %c0_13] : memref<8x256xf32, #tpu.memory_space<vmem>>, vector<8x256xf32>
    tpu.vector_store %arg3[%c0_12, %c0_13], %26 {strides = array<i32>} : memref<8x256xf32, #tpu.memory_space<vmem>>, vector<8x256xf32>,
    return
  }
}

</mosaic_0001>

<llo_original>
// kernel: tpu_custom_call.1
$region0: #{tpu_custom_call.1}
  #allocation0 [shape = 'u32[]', space=smem, size = 0x4, offset = 0x4, fixed_abs, tag = 'smem constant byte address 0x4 - core index']
  #allocation1 [shape = 'u32[144,128]{1,0:T(1,128)}', space=vmem, size = 0x12000, scoped, tag = 'internal scratch']
  %s0 = inlined_call_operand.hbm [shape: f32[8,16,16], index: 0, kind: input, shape index: {}]
  %s1 = inlined_call_operand.hbm [shape: f32[16,36], index: 1, kind: input, shape index: {}]
  %s2 = inlined_call_operand.hbm [shape: f32[64,256], index: 2, kind: input, shape index: {}]
  %s3 = inlined_call_operand.hbm [shape: f32[8,256], index: 3, kind: output, shape index: {}]
  %s4 = sld [smem:[#allocation0]]
  $region34: #{tpu_custom_call.1} parent=0
    _
  %s6 = ssub.s32 1, %s4
  %s7 = scalar_select 0, %s6, %s4
  $region1: #{tpu_custom_call.1} parent=0
    #allocation2 [shape = 'u8[65536]{0}', space=vmem, size = 0x10000, scoped, tag = 'input window, operand 0, single buffered']
    #allocation3 [shape = 's32[1]{0}', space=sflag, size = 0x4, scoped, tag = 'scoped memory for tpu_custom_call.1']
    #allocation4 [shape = 's32[1]{0}', space=sflag, size = 0x4, scoped, tag = 'scoped memory for tpu_custom_call.1']
    #allocation5 [shape = 'u8[8192]{0}', space=vmem, size = 0x2000, scoped, tag = 'input window, operand 1, single buffered']
    #allocation6 [shape = 's32[1]{0}', space=sflag, size = 0x4, scoped, tag = 'scoped memory for tpu_custom_call.1']
    #allocation7 [shape = 'u8[65536]{0}', space=vmem, size = 0x10000, scoped, tag = 'input window, operand 2, single buffered']
    #allocation8 [shape = 'u8[8192]{0}', space=vmem, size = 0x2000, scoped, tag = 'output window, operand 0, single buffered']
    %8 = vsyncpa [#allocation3], 0
    %9 = vsyncpa [#allocation6], 0
    %10 = vsyncpa [#allocation4], 0
    // Predicated region
    $region2: #{tpu_custom_call.1} parent=1 // pred_check
      _
    $region3: #{tpu_custom_call.1} parent=1 // pred_check_branch
      %12 = sbr.rel (0) target = $region5
    $region4: #{tpu_custom_call.1} parent=1 // pred_region
      %s14 = ssub.s32 2048, 2048
      %15 = vsyncadd [#allocation3], %s14
      %s16 = sshll.u32 [#allocation2], 4
      %s17 = int_to_ptr.vmem [resolvable:$true] %s16
      %22 = dma.hbm_to_vmem [thread:$0]  %s0, 2048, %s17, [#allocation3], 128, 128, 8
    $region5: #{tpu_custom_call.1} parent=1 // pred_fallthru
      _
    // Predicated region
    $region6: #{tpu_custom_call.1} parent=1 // pred_check
      _
    $region7: #{tpu_custom_call.1} parent=1 // pred_check_branch
      %24 = sbr.rel (0) target = $region9
    $region8: #{tpu_custom_call.1} parent=1 // pred_region
      %s26 = ssub.s32 256, 256
      %27 = vsyncadd [#allocation6], %s26
      %s28 = sshll.u32 [#allocation5], 4
      %s29 = int_to_ptr.vmem [resolvable:$true] %s28
      %34 = dma.hbm_to_vmem [thread:$0]  %s1, 256, %s29, [#allocation6], 128, 128, 8
    $region9: #{tpu_custom_call.1} parent=1 // pred_fallthru
      _
    // Predicated region
    $region10: #{tpu_custom_call.1} parent=1 // pred_check
      _
    $region11: #{tpu_custom_call.1} parent=1 // pred_check_branch
      %36 = sbr.rel (0) target = $region13
    $region12: #{tpu_custom_call.1} parent=1 // pred_region
      %s38 = ssub.s32 2048, 2048
      %39 = vsyncadd [#allocation6], %s38
      %s40 = sshll.u32 [#allocation7], 4
      %s41 = int_to_ptr.vmem [resolvable:$true] %s40
      %46 = dma.hbm_to_vmem [thread:$0]  %s2, 2048, %s41, [#allocation6], 256, 256, 16
    $region13: #{tpu_custom_call.1} parent=1 // pred_fallthru
      _
    // Predicated region
    $region14: #{tpu_custom_call.1} parent=1 // pred_check
      _
    $region15: #{tpu_custom_call.1} parent=1 // pred_check_branch
      %48 = sbr.rel (0) target = $region17
    $region16: #{tpu_custom_call.1} parent=1 // pred_region
      %49 = dma.done [#allocation3], 2048
    $region17: #{tpu_custom_call.1} parent=1 // pred_fallthru
      _
    // Predicated region
    $region18: #{tpu_custom_call.1} parent=1 // pred_check
      _
    $region19: #{tpu_custom_call.1} parent=1 // pred_check_branch
      %51 = sbr.rel (0) target = $region21
    $region20: #{tpu_custom_call.1} parent=1 // pred_region
      %52 = dma.done [#allocation6], 256
    $region21: #{tpu_custom_call.1} parent=1 // pred_fallthru
      _
    // Predicated region
    $region22: #{tpu_custom_call.1} parent=1 // pred_check
      _
    $region23: #{tpu_custom_call.1} parent=1 // pred_check_branch
      %54 = sbr.rel (0) target = $region25
    $region24: #{tpu_custom_call.1} parent=1 // pred_region
      %55 = dma.done [#allocation6], 2048
    $region25: #{tpu_custom_call.1} parent=1 // pred_fallthru
      _
    %v56 = vld [vmem:[#allocation2] sm:$0xff]
    %v57 = vld [vmem:[#allocation2 + $0x8] sm:$0xff]
    %v58 = vld [vmem:[#allocation2 + $0x10] sm:$0xff]
    %v59 = vld [vmem:[#allocation2 + $0x18] sm:$0xff]
    %v60 = vld [vmem:[#allocation2 + $0x20] sm:$0xff]
    %v61 = vld [vmem:[#allocation2 + $0x28] sm:$0xff]
    %v62 = vld [vmem:[#allocation2 + $0x30] sm:$0xff]
    %v63 = vld [vmem:[#allocation2 + $0x38] sm:$0xff]
    %v64 = vld [vmem:[#allocation2 + $0x40] sm:$0xff]
    %v65 = vld [vmem:[#allocation2 + $0x48] sm:$0xff]
    %v66 = vld [vmem:[#allocation2 + $0x50] sm:$0xff]
    %v67 = vld [vmem:[#allocation2 + $0x58] sm:$0xff]
    %v68 = vld [vmem:[#allocation2 + $0x60] sm:$0xff]
    %v69 = vld [vmem:[#allocation2 + $0x68] sm:$0xff]
    %v70 = vld [vmem:[#allocation2 + $0x70] sm:$0xff]
    %v71 = vld [vmem:[#allocation2 + $0x78] sm:$0xff]
    %v72 = vld [vmem:[#allocation5] sm:$0xff]
    %v73 = vld [vmem:[#allocation5 + $0x8] sm:$0xff]
    %vm74 = vcmask 130048
    %v76 = vsel %vm74, %v56, 0
    %v79 = vsel %vm74, %v57, 0
    %v82 = vsel %vm74, %v58, 0
    %v85 = vsel %vm74, %v59, 0
    %v88 = vsel %vm74, %v60, 0
    %v91 = vsel %vm74, %v61, 0
    %v94 = vsel %vm74, %v62, 0
    %v97 = vsel %vm74, %v63, 0
    %v100 = vsel %vm74, %v64, 0
    %v103 = vsel %vm74, %v65, 0
    %v106 = vsel %vm74, %v66, 0
    %v109 = vsel %vm74, %v67, 0
    %v112 = vsel %vm74, %v68, 0
    %v115 = vsel %vm74, %v69, 0
    %v118 = vsel %vm74, %v70, 0
    %v121 = vsel %vm74, %v71, 0
    %123 = vmatprep.subr.mxu0 0.0
    %124 = vmatpush1.msra.mxu0 0.0
    %125 = vmatprep.subr.mxu0 0.0
    %126 = vmatpush1.msra.mxu0 0.0
    %127 = vmatprep.subr.mxu0 0.0
    %128 = vmatpush1.msra.mxu0 0.0
    %129 = vmatprep.subr.mxu0 0.0
    %130 = vmatpush1.msra.mxu0 0.0
    %131 = vmatprep.subr.mxu0 0.0
    %132 = vmatpush1.msra.mxu0 0.0
    %133 = vmatprep.subr.mxu0 0.0
    %134 = vmatpush1.msra.mxu0 0.0
    %135 = vmatprep.subr.mxu0 0.0
    %136 = vmatpush1.msra.mxu0 0.0
    %137 = vmatprep.subr.mxu0 0.0
    %138 = vmatpush1.msra.mxu0 0.0
    %139 = vmatprep.subr.mxu0 0.0
    %140 = vmatpush1.msra.mxu0 0.0
    %141 = vmatprep.subr.mxu0 0.0
    %142 = vmatpush1.msra.mxu0 0.0
    %143 = vmatprep.subr.mxu0 0.0
    %144 = vmatpush1.msra.mxu0 0.0
    %145 = vmatprep.subr.mxu0 0.0
    %146 = vmatpush1.msra.mxu0 0.0
    %147 = vmatprep.subr.mxu0 0.0
    %148 = vmatpush1.msra.mxu0 0.0
    %149 = vmatprep.subr.mxu0 0.0
    %150 = vmatpush1.msra.mxu0 0.0
    %151 = vmatprep.subr.mxu0 0.0
    %152 = vmatpush1.msra.mxu0 %v73
    %153 = vmatprep.subr.mxu0 0.0
    %154 = vmatpush1.msra.mxu0 %v72
    %155 = vmatprep.subr.mxu0 0.0
    %156 = vmatpush2.msra.mxu0 0.0
    %157 = vmatprep.subr.mxu0 0.0
    %158 = vmatpush2.msra.mxu0 0.0
    %159 = vmatprep.subr.mxu0 0.0
    %160 = vmatpush2.msra.mxu0 0.0
    %161 = vmatprep.subr.mxu0 0.0
    %162 = vmatpush2.msra.mxu0 0.0
    %163 = vmatprep.subr.mxu0 0.0
    %164 = vmatpush2.msra.mxu0 0.0
    %165 = vmatprep.subr.mxu0 0.0
    %166 = vmatpush2.msra.mxu0 0.0
    %167 = vmatprep.subr.mxu0 0.0
    %168 = vmatpush2.msra.mxu0 0.0
    %169 = vmatprep.subr.mxu0 0.0
    %170 = vmatpush2.msra.mxu0 0.0
    %171 = vmatprep.subr.mxu0 0.0
    %172 = vmatpush2.msra.mxu0 0.0
    %173 = vmatprep.subr.mxu0 0.0
    %174 = vmatpush2.msra.mxu0 0.0
    %175 = vmatprep.subr.mxu0 0.0
    %176 = vmatpush2.msra.mxu0 0.0
    %177 = vmatprep.subr.mxu0 0.0
    %178 = vmatpush2.msra.mxu0 0.0
    %179 = vmatprep.subr.mxu0 0.0
    %180 = vmatpush2.msra.mxu0 0.0
    %181 = vmatprep.subr.mxu0 0.0
    %182 = vmatpush2.msra.mxu0 0.0
    %183 = vmatprep.subr.mxu0 0.0
    %184 = vmatpush2.msra.mxu0 0.0
    %185 = vmatprep.subr.mxu0 0.0
    %186 = vmatpush2.msra.mxu0 0.0
    %187 = vmatprep.mubr.f32.mxu0 0.0
    %188 = vmatmul.mubr.f32.gmra.mxu0 %v76
    %v189 = vpop.f32.mrf.mxu0
    %v190 = vadd.f32 0.0, %v189
    %v191 = vpop.f32.mrf.mxu0
    %192 = vmatprep.mubr.f32.mxu0 0.0
    %193 = vmatmul.mubr.f32.gmra.mxu0 %v79
    %v194 = vpop.f32.mrf.mxu0
    %v195 = vadd.f32 0.0, %v194
    %v196 = vpop.f32.mrf.mxu0
    %197 = vmatprep.mubr.f32.mxu0 0.0
    %198 = vmatmul.mubr.f32.gmra.mxu0 %v82
    %v199 = vpop.f32.mrf.mxu0
    %v200 = vadd.f32 0.0, %v199
    %v201 = vpop.f32.mrf.mxu0
    %202 = vmatprep.mubr.f32.mxu0 0.0
    %203 = vmatmul.mubr.f32.gmra.mxu0 %v85
    %v204 = vpop.f32.mrf.mxu0
    %v205 = vadd.f32 0.0, %v204
    %v206 = vpop.f32.mrf.mxu0
    %207 = vmatprep.mubr.f32.mxu0 0.0
    %208 = vmatmul.mubr.f32.gmra.mxu0 %v88
    %v209 = vpop.f32.mrf.mxu0
    %v210 = vadd.f32 0.0, %v209
    %v211 = vpop.f32.mrf.mxu0
    %212 = vmatprep.mubr.f32.mxu0 0.0
    %213 = vmatmul.mubr.f32.gmra.mxu0 %v91
    %v214 = vpop.f32.mrf.mxu0
    %v215 = vadd.f32 0.0, %v214
    %v216 = vpop.f32.mrf.mxu0
    %217 = vmatprep.mubr.f32.mxu0 0.0
    %218 = vmatmul.mubr.f32.gmra.mxu0 %v94
    %v219 = vpop.f32.mrf.mxu0
    %v220 = vadd.f32 0.0, %v219
    %v221 = vpop.f32.mrf.mxu0
    %222 = vmatprep.mubr.f32.mxu0 0.0
    %223 = vmatmul.mubr.f32.gmra.mxu0 %v97
    %v224 = vpop.f32.mrf.mxu0
    %v225 = vadd.f32 0.0, %v224
    %v226 = vpop.f32.mrf.mxu0
    %227 = vmatprep.mubr.f32.mxu0 0.0
    %228 = vmatmul.mubr.f32.gmra.mxu0 %v100
    %v229 = vpop.f32.mrf.mxu0
    %v230 = vadd.f32 0.0, %v229
    %v231 = vpop.f32.mrf.mxu0
    %232 = vmatprep.mubr.f32.mxu0 0.0
    %233 = vmatmul.mubr.f32.gmra.mxu0 %v103
    %v234 = vpop.f32.mrf.mxu0
    %v235 = vadd.f32 0.0, %v234
    %v236 = vpop.f32.mrf.mxu0
    %237 = vmatprep.mubr.f32.mxu0 0.0
    %238 = vmatmul.mubr.f32.gmra.mxu0 %v106
    %v239 = vpop.f32.mrf.mxu0
    %v240 = vadd.f32 0.0, %v239
    %v241 = vpop.f32.mrf.mxu0
    %242 = vmatprep.mubr.f32.mxu0 0.0
    %243 = vmatmul.mubr.f32.gmra.mxu0 %v109
    %v244 = vpop.f32.mrf.mxu0
    %v245 = vadd.f32 0.0, %v244
    %v246 = vpop.f32.mrf.mxu0
    %247 = vmatprep.mubr.f32.mxu0 0.0
    %248 = vmatmul.mubr.f32.gmra.mxu0 %v112
    %v249 = vpop.f32.mrf.mxu0
    %v250 = vadd.f32 0.0, %v249
    %v251 = vpop.f32.mrf.mxu0
    %252 = vmatprep.mubr.f32.mxu0 0.0
    %253 = vmatmul.mubr.f32.gmra.mxu0 %v115
    %v254 = vpop.f32.mrf.mxu0
    %v255 = vadd.f32 0.0, %v254
    %v256 = vpop.f32.mrf.mxu0
    %257 = vmatprep.mubr.f32.mxu0 0.0
    %258 = vmatmul.mubr.f32.gmra.mxu0 %v118
    %v259 = vpop.f32.mrf.mxu0
    %v260 = vadd.f32 0.0, %v259
    %v261 = vpop.f32.mrf.mxu0
    %262 = vmatprep.mubr.f32.mxu0 0.0
    %263 = vmatmul.mubr.f32.gmra.mxu0 %v121
    %v264 = vpop.f32.mrf.mxu0
    %v265 = vadd.f32 0.0, %v264
    %v266 = vpop.f32.mrf.mxu0
    %267 = vdwg.mxu0
    %270 = vrot.lane.b32.xlu0 %v190, 112
    %v271 = vpop.permute.xlu0 %270
    %272 = vrot.lane.b32.xlu0 %v195, 112
    %v273 = vpop.permute.xlu0 %272
    %v274 = vsel %vm74, %v190, 0
    %v276 = vsel %vm74, %v195, 0
    %v278 = vsel %vm74, %v271, 0
    %v280 = vsel %vm74, %v273, 0
    %282 = vmatprep.subr.mxu0 0.0
    %283 = vmatpush1.xpose.msra.mxu0 0.0
    %284 = vmatprep.subr.mxu0 0.0
    %285 = vmatpush1.xpose.msra.mxu0 0.0
    %286 = vmatprep.subr.mxu0 0.0
    %287 = vmatpush1.xpose.msra.mxu0 0.0
    %288 = vmatprep.subr.mxu0 0.0
    %289 = vmatpush1.xpose.msra.mxu0 0.0
    %290 = vmatprep.subr.mxu0 0.0
    %291 = vmatpush1.xpose.msra.mxu0 0.0
    %292 = vmatprep.subr.mxu0 0.0
    %293 = vmatpush1.xpose.msra.mxu0 0.0
    %294 = vmatprep.subr.mxu0 0.0
    %295 = vmatpush1.xpose.msra.mxu0 0.0
    %296 = vmatprep.subr.mxu0 0.0
    %297 = vmatpush1.xpose.msra.mxu0 0.0
    %298 = vmatprep.subr.mxu0 0.0
    %299 = vmatpush1.xpose.msra.mxu0 0.0
    %300 = vmatprep.subr.mxu0 0.0
    %301 = vmatpush1.xpose.msra.mxu0 0.0
    %302 = vmatprep.subr.mxu0 0.0
    %303 = vmatpush1.xpose.msra.mxu0 0.0
    %304 = vmatprep.subr.mxu0 0.0
    %305 = vmatpush1.xpose.msra.mxu0 0.0
    %306 = vmatprep.subr.mxu0 0.0
    %307 = vmatpush1.xpose.msra.mxu0 0.0
    %308 = vmatprep.subr.mxu0 0.0
    %309 = vmatpush1.xpose.msra.mxu0 0.0
    %310 = vmatprep.subr.mxu0 0.0
    %311 = vmatpush1.xpose.msra.mxu0 %v280
    %312 = vmatprep.subr.mxu0 0.0
    %313 = vmatpush1.xpose.msra.mxu0 %v278
    %314 = vmatprep.subr.mxu0 0.0
    %315 = vmatpush2.xpose.msra.mxu0 0.0
    %316 = vmatprep.subr.mxu0 0.0
    %317 = vmatpush2.xpose.msra.mxu0 0.0
    %318 = vmatprep.subr.mxu0 0.0
    %319 = vmatpush2.xpose.msra.mxu0 0.0
    %320 = vmatprep.subr.mxu0 0.0
    %321 = vmatpush2.xpose.msra.mxu0 0.0
    %322 = vmatprep.subr.mxu0 0.0
    %323 = vmatpush2.xpose.msra.mxu0 0.0
    %324 = vmatprep.subr.mxu0 0.0
    %325 = vmatpush2.xpose.msra.mxu0 0.0
    %326 = vmatprep.subr.mxu0 0.0
    %327 = vmatpush2.xpose.msra.mxu0 0.0
    %328 = vmatprep.subr.mxu0 0.0
    %329 = vmatpush2.xpose.msra.mxu0 0.0
    %330 = vmatprep.subr.mxu0 0.0
    %331 = vmatpush2.xpose.msra.mxu0 0.0
    %332 = vmatprep.subr.mxu0 0.0
    %333 = vmatpush2.xpose.msra.mxu0 0.0
    %334 = vmatprep.subr.mxu0 0.0
    %335 = vmatpush2.xpose.msra.mxu0 0.0
    %336 = vmatprep.subr.mxu0 0.0
    %337 = vmatpush2.xpose.msra.mxu0 0.0
    %338 = vmatprep.subr.mxu0 0.0
    %339 = vmatpush2.xpose.msra.mxu0 0.0
    %340 = vmatprep.subr.mxu0 0.0
    %341 = vmatpush2.xpose.msra.mxu0 0.0
    %342 = vmatprep.subr.mxu0 0.0
    %343 = vmatpush2.xpose.msra.mxu0 0.0
    %344 = vmatprep.subr.mxu0 0.0
    %345 = vmatpush2.xpose.msra.mxu0 0.0
    %346 = vmatprep.mubr.f32.mxu0 0.0
    %347 = vmatmul.mubr.f32.gmra.mxu0 %v274
    %v348 = vpop.f32.mrf.mxu0
    %v349 = vadd.f32 0.0, %v348
    %v350 = vpop.f32.mrf.mxu0
    %351 = vmatprep.mubr.f32.mxu0 0.0
    %352 = vmatmul.mubr.f32.gmra.mxu0 %v276
    %v353 = vpop.f32.mrf.mxu0
    %v354 = vadd.f32 0.0, %v353
    %v355 = vpop.f32.mrf.mxu0
    %356 = vdwg.mxu0
    %359 = vrot.lane.b32.xlu0 %v200, 112
    %v360 = vpop.permute.xlu0 %359
    %361 = vrot.lane.b32.xlu0 %v205, 112
    %v362 = vpop.permute.xlu0 %361
    %v363 = vsel %vm74, %v200, 0
    %v365 = vsel %vm74, %v205, 0
    %v367 = vsel %vm74, %v360, 0
    %v369 = vsel %vm74, %v362, 0
    %371 = vmatprep.subr.mxu0 0.0
    %372 = vmatpush1.xpose.msra.mxu0 0.0
    %373 = vmatprep.subr.mxu0 0.0
    %374 = vmatpush1.xpose.msra.mxu0 0.0
    %375 = vmatprep.subr.mxu0 0.0
    %376 = vmatpush1.xpose.msra.mxu0 0.0
    %377 = vmatprep.subr.mxu0 0.0
    %378 = vmatpush1.xpose.msra.mxu0 0.0
    %379 = vmatprep.subr.mxu0 0.0
    %380 = vmatpush1.xpose.msra.mxu0 0.0
    %381 = vmatprep.subr.mxu0 0.0
    %382 = vmatpush1.xpose.msra.mxu0 0.0
    %383 = vmatprep.subr.mxu0 0.0
    %384 = vmatpush1.xpose.msra.mxu0 0.0
    %385 = vmatprep.subr.mxu0 0.0
    %386 = vmatpush1.xpose.msra.mxu0 0.0
    %387 = vmatprep.subr.mxu0 0.0
    %388 = vmatpush1.xpose.msra.mxu0 0.0
    %389 = vmatprep.subr.mxu0 0.0
    %390 = vmatpush1.xpose.msra.mxu0 0.0
    %391 = vmatprep.subr.mxu0 0.0
    %392 = vmatpush1.xpose.msra.mxu0 0.0
    %393 = vmatprep.subr.mxu0 0.0
    %394 = vmatpush1.xpose.msra.mxu0 0.0
    %395 = vmatprep.subr.mxu0 0.0
    %396 = vmatpush1.xpose.msra.mxu0 0.0
    %397 = vmatprep.subr.mxu0 0.0
    %398 = vmatpush1.xpose.msra.mxu0 0.0
    %399 = vmatprep.subr.mxu0 0.0
    %400 = vmatpush1.xpose.msra.mxu0 %v369
    %401 = vmatprep.subr.mxu0 0.0
    %402 = vmatpush1.xpose.msra.mxu0 %v367
    %403 = vmatprep.subr.mxu0 0.0
    %404 = vmatpush2.xpose.msra.mxu0 0.0
    %405 = vmatprep.subr.mxu0 0.0
    %406 = vmatpush2.xpose.msra.mxu0 0.0
    %407 = vmatprep.subr.mxu0 0.0
    %408 = vmatpush2.xpose.msra.mxu0 0.0
    %409 = vmatprep.subr.mxu0 0.0
    %410 = vmatpush2.xpose.msra.mxu0 0.0
    %411 = vmatprep.subr.mxu0 0.0
    %412 = vmatpush2.xpose.msra.mxu0 0.0
    %413 = vmatprep.subr.mxu0 0.0
    %414 = vmatpush2.xpose.msra.mxu0 0.0
    %415 = vmatprep.subr.mxu0 0.0
    %416 = vmatpush2.xpose.msra.mxu0 0.0
    %417 = vmatprep.subr.mxu0 0.0
    %418 = vmatpush2.xpose.msra.mxu0 0.0
    %419 = vmatprep.subr.mxu0 0.0
    %420 = vmatpush2.xpose.msra.mxu0 0.0
    %421 = vmatprep.subr.mxu0 0.0
    %422 = vmatpush2.xpose.msra.mxu0 0.0
    %423 = vmatprep.subr.mxu0 0.0
    %424 = vmatpush2.xpose.msra.mxu0 0.0
    %425 = vmatprep.subr.mxu0 0.0
    %426 = vmatpush2.xpose.msra.mxu0 0.0
    %427 = vmatprep.subr.mxu0 0.0
    %428 = vmatpush2.xpose.msra.mxu0 0.0
    %429 = vmatprep.subr.mxu0 0.0
    %430 = vmatpush2.xpose.msra.mxu0 0.0
    %431 = vmatprep.subr.mxu0 0.0
    %432 = vmatpush2.xpose.msra.mxu0 0.0
    %433 = vmatprep.subr.mxu0 0.0
    %434 = vmatpush2.xpose.msra.mxu0 0.0
    %435 = vmatprep.mubr.f32.mxu0 0.0
    %436 = vmatmul.mubr.f32.gmra.mxu0 %v363
    %v437 = vpop.f32.mrf.mxu0
    %v438 = vadd.f32 0.0, %v437
    %v439 = vpop.f32.mrf.mxu0
    %440 = vmatprep.mubr.f32.mxu0 0.0
    %441 = vmatmul.mubr.f32.gmra.mxu0 %v365
    %v442 = vpop.f32.mrf.mxu0
    %v443 = vadd.f32 0.0, %v442
    %v444 = vpop.f32.mrf.mxu0
    %445 = vdwg.mxu0
    %448 = vrot.lane.b32.xlu0 %v210, 112
    %v449 = vpop.permute.xlu0 %448
    %450 = vrot.lane.b32.xlu0 %v215, 112
    %v451 = vpop.permute.xlu0 %450
    %v452 = vsel %vm74, %v210, 0
    %v454 = vsel %vm74, %v215, 0
    %v456 = vsel %vm74, %v449, 0
    %v458 = vsel %vm74, %v451, 0
    %460 = vmatprep.subr.mxu0 0.0
    %461 = vmatpush1.xpose.msra.mxu0 0.0
    %462 = vmatprep.subr.mxu0 0.0
    %463 = vmatpush1.xpose.msra.mxu0 0.0
    %464 = vmatprep.subr.mxu0 0.0
    %465 = vmatpush1.xpose.msra.mxu0 0.0
    %466 = vmatprep.subr.mxu0 0.0
    %467 = vmatpush1.xpose.msra.mxu0 0.0
    %468 = vmatprep.subr.mxu0 0.0
    %469 = vmatpush1.xpose.msra.mxu0 0.0
    %470 = vmatprep.subr.mxu0 0.0
    %471 = vmatpush1.xpose.msra.mxu0 0.0
    %472 = vmatprep.subr.mxu0 0.0
    %473 = vmatpush1.xpose.msra.mxu0 0.0
    %474 = vmatprep.subr.mxu0 0.0
    %475 = vmatpush1.xpose.msra.mxu0 0.0
    %476 = vmatprep.subr.mxu0 0.0
    %477 = vmatpush1.xpose.msra.mxu0 0.0
    %478 = vmatprep.subr.mxu0 0.0
    %479 = vmatpush1.xpose.msra.mxu0 0.0
    %480 = vmatprep.subr.mxu0 0.0
    %481 = vmatpush1.xpose.msra.mxu0 0.0
    %482 = vmatprep.subr.mxu0 0.0
    %483 = vmatpush1.xpose.msra.mxu0 0.0
    %484 = vmatprep.subr.mxu0 0.0
    %485 = vmatpush1.xpose.msra.mxu0 0.0
    %486 = vmatprep.subr.mxu0 0.0
    %487 = vmatpush1.xpose.msra.mxu0 0.0
    %488 = vmatprep.subr.mxu0 0.0
    %489 = vmatpush1.xpose.msra.mxu0 %v458
    %490 = vmatprep.subr.mxu0 0.0
    %491 = vmatpush1.xpose.msra.mxu0 %v456
    %492 = vmatprep.subr.mxu0 0.0
    %493 = vmatpush2.xpose.msra.mxu0 0.0
    %494 = vmatprep.subr.mxu0 0.0
    %495 = vmatpush2.xpose.msra.mxu0 0.0
    %496 = vmatprep.subr.mxu0 0.0
    %497 = vmatpush2.xpose.msra.mxu0 0.0
    %498 = vmatprep.subr.mxu0 0.0
    %499 = vmatpush2.xpose.msra.mxu0 0.0
    %500 = vmatprep.subr.mxu0 0.0
    %501 = vmatpush2.xpose.msra.mxu0 0.0
    %502 = vmatprep.subr.mxu0 0.0
    %503 = vmatpush2.xpose.msra.mxu0 0.0
    %504 = vmatprep.subr.mxu0 0.0
    %505 = vmatpush2.xpose.msra.mxu0 0.0
    %506 = vmatprep.subr.mxu0 0.0
    %507 = vmatpush2.xpose.msra.mxu0 0.0
    %508 = vmatprep.subr.mxu0 0.0
    %509 = vmatpush2.xpose.msra.mxu0 0.0
    %510 = vmatprep.subr.mxu0 0.0
    %511 = vmatpush2.xpose.msra.mxu0 0.0
    %512 = vmatprep.subr.mxu0 0.0
    %513 = vmatpush2.xpose.msra.mxu0 0.0
    %514 = vmatprep.subr.mxu0 0.0
    %515 = vmatpush2.xpose.msra.mxu0 0.0
    %516 = vmatprep.subr.mxu0 0.0
    %517 = vmatpush2.xpose.msra.mxu0 0.0
    %518 = vmatprep.subr.mxu0 0.0
    %519 = vmatpush2.xpose.msra.mxu0 0.0
    %520 = vmatprep.subr.mxu0 0.0
    %521 = vmatpush2.xpose.msra.mxu0 0.0
    %522 = vmatprep.subr.mxu0 0.0
    %523 = vmatpush2.xpose.msra.mxu0 0.0
    %524 = vmatprep.mubr.f32.mxu0 0.0
    %525 = vmatmul.mubr.f32.gmra.mxu0 %v452
    %v526 = vpop.f32.mrf.mxu0
    %v527 = vadd.f32 0.0, %v526
    %v528 = vpop.f32.mrf.mxu0
    %529 = vmatprep.mubr.f32.mxu0 0.0
    %530 = vmatmul.mubr.f32.gmra.mxu0 %v454
    %v531 = vpop.f32.mrf.mxu0
    %v532 = vadd.f32 0.0, %v531
    %v533 = vpop.f32.mrf.mxu0
    %534 = vdwg.mxu0
    %537 = vrot.lane.b32.xlu0 %v220, 112
    %v538 = vpop.permute.xlu0 %537
    %539 = vrot.lane.b32.xlu0 %v225, 112
    %v540 = vpop.permute.xlu0 %539
    %v541 = vsel %vm74, %v220, 0
    %v543 = vsel %vm74, %v225, 0
    %v545 = vsel %vm74, %v538, 0
    %v547 = vsel %vm74, %v540, 0
    %549 = vmatprep.subr.mxu0 0.0
    %550 = vmatpush1.xpose.msra.mxu0 0.0
    %551 = vmatprep.subr.mxu0 0.0
    %552 = vmatpush1.xpose.msra.mxu0 0.0
    %553 = vmatprep.subr.mxu0 0.0
    %554 = vmatpush1.xpose.msra.mxu0 0.0
    %555 = vmatprep.subr.mxu0 0.0
    %556 = vmatpush1.xpose.msra.mxu0 0.0
    %557 = vmatprep.subr.mxu0 0.0
    %558 = vmatpush1.xpose.msra.mxu0 0.0
    %559 = vmatprep.subr.mxu0 0.0
    %560 = vmatpush1.xpose.msra.mxu0 0.0
    %561 = vmatprep.subr.mxu0 0.0
    %562 = vmatpush1.xpose.msra.mxu0 0.0
    %563 = vmatprep.subr.mxu0 0.0
    %564 = vmatpush1.xpose.msra.mxu0 0.0
    %565 = vmatprep.subr.mxu0 0.0
    %566 = vmatpush1.xpose.msra.mxu0 0.0
    %567 = vmatprep.subr.mxu0 0.0
    %568 = vmatpush1.xpose.msra.mxu0 0.0
    %569 = vmatprep.subr.mxu0 0.0
    %570 = vmatpush1.xpose.msra.mxu0 0.0
    %571 = vmatprep.subr.mxu0 0.0
    %572 = vmatpush1.xpose.msra.mxu0 0.0
    %573 = vmatprep.subr.mxu0 0.0
    %574 = vmatpush1.xpose.msra.mxu0 0.0
    %575 = vmatprep.subr.mxu0 0.0
    %576 = vmatpush1.xpose.msra.mxu0 0.0
    %577 = vmatprep.subr.mxu0 0.0
    %578 = vmatpush1.xpose.msra.mxu0 %v547
    %579 = vmatprep.subr.mxu0 0.0
    %580 = vmatpush1.xpose.msra.mxu0 %v545
    %581 = vmatprep.subr.mxu0 0.0
    %582 = vmatpush2.xpose.msra.mxu0 0.0
    %583 = vmatprep.subr.mxu0 0.0
    %584 = vmatpush2.xpose.msra.mxu0 0.0
    %585 = vmatprep.subr.mxu0 0.0
    %586 = vmatpush2.xpose.msra.mxu0 0.0
    %587 = vmatprep.subr.mxu0 0.0
    %588 = vmatpush2.xpose.msra.mxu0 0.0
    %589 = vmatprep.subr.mxu0 0.0
    %590 = vmatpush2.xpose.msra.mxu0 0.0
    %591 = vmatprep.subr.mxu0 0.0
    %592 = vmatpush2.xpose.msra.mxu0 0.0
    %593 = vmatprep.subr.mxu0 0.0
    %594 = vmatpush2.xpose.msra.mxu0 0.0
    %595 = vmatprep.subr.mxu0 0.0
    %596 = vmatpush2.xpose.msra.mxu0 0.0
    %597 = vmatprep.subr.mxu0 0.0
    %598 = vmatpush2.xpose.msra.mxu0 0.0
    %599 = vmatprep.subr.mxu0 0.0
    %600 = vmatpush2.xpose.msra.mxu0 0.0
    %601 = vmatprep.subr.mxu0 0.0
    %602 = vmatpush2.xpose.msra.mxu0 0.0
    %603 = vmatprep.subr.mxu0 0.0
    %604 = vmatpush2.xpose.msra.mxu0 0.0
    %605 = vmatprep.subr.mxu0 0.0
    %606 = vmatpush2.xpose.msra.mxu0 0.0
    %607 = vmatprep.subr.mxu0 0.0
    %608 = vmatpush2.xpose.msra.mxu0 0.0
    %609 = vmatprep.subr.mxu0 0.0
    %610 = vmatpush2.xpose.msra.mxu0 0.0
    %611 = vmatprep.subr.mxu0 0.0
    %612 = vmatpush2.xpose.msra.mxu0 0.0
    %613 = vmatprep.mubr.f32.mxu0 0.0
    %614 = vmatmul.mubr.f32.gmra.mxu0 %v541
    %v615 = vpop.f32.mrf.mxu0
    %v616 = vadd.f32 0.0, %v615
    %v617 = vpop.f32.mrf.mxu0
    %618 = vmatprep.mubr.f32.mxu0 0.0
    %619 = vmatmul.mubr.f32.gmra.mxu0 %v543
    %v620 = vpop.f32.mrf.mxu0
    %v621 = vadd.f32 0.0, %v620
    %v622 = vpop.f32.mrf.mxu0
    %623 = vdwg.mxu0
    %626 = vrot.lane.b32.xlu0 %v230, 112
    %v627 = vpop.permute.xlu0 %626
    %628 = vrot.lane.b32.xlu0 %v235, 112
    %v629 = vpop.permute.xlu0 %628
    %v630 = vsel %vm74, %v230, 0
    %v632 = vsel %vm74, %v235, 0
    %v634 = vsel %vm74, %v627, 0
    %v636 = vsel %vm74, %v629, 0
    %638 = vmatprep.subr.mxu0 0.0
    %639 = vmatpush1.xpose.msra.mxu0 0.0
    %640 = vmatprep.subr.mxu0 0.0
    %641 = vmatpush1.xpose.msra.mxu0 0.0
    %642 = vmatprep.subr.mxu0 0.0
    %643 = vmatpush1.xpose.msra.mxu0 0.0
    %644 = vmatprep.subr.mxu0 0.0
    %645 = vmatpush1.xpose.msra.mxu0 0.0
    %646 = vmatprep.subr.mxu0 0.0
    %647 = vmatpush1.xpose.msra.mxu0 0.0
    %648 = vmatprep.subr.mxu0 0.0
    %649 = vmatpush1.xpose.msra.mxu0 0.0
    %650 = vmatprep.subr.mxu0 0.0
    %651 = vmatpush1.xpose.msra.mxu0 0.0
    %652 = vmatprep.subr.mxu0 0.0
    %653 = vmatpush1.xpose.msra.mxu0 0.0
    %654 = vmatprep.subr.mxu0 0.0
    %655 = vmatpush1.xpose.msra.mxu0 0.0
    %656 = vmatprep.subr.mxu0 0.0
    %657 = vmatpush1.xpose.msra.mxu0 0.0
    %658 = vmatprep.subr.mxu0 0.0
    %659 = vmatpush1.xpose.msra.mxu0 0.0
    %660 = vmatprep.subr.mxu0 0.0
    %661 = vmatpush1.xpose.msra.mxu0 0.0
    %662 = vmatprep.subr.mxu0 0.0
    %663 = vmatpush1.xpose.msra.mxu0 0.0
    %664 = vmatprep.subr.mxu0 0.0
    %665 = vmatpush1.xpose.msra.mxu0 0.0
    %666 = vmatprep.subr.mxu0 0.0
    %667 = vmatpush1.xpose.msra.mxu0 %v636
    %668 = vmatprep.subr.mxu0 0.0
    %669 = vmatpush1.xpose.msra.mxu0 %v634
    %670 = vmatprep.subr.mxu0 0.0
    %671 = vmatpush2.xpose.msra.mxu0 0.0
    %672 = vmatprep.subr.mxu0 0.0
    %673 = vmatpush2.xpose.msra.mxu0 0.0
    %674 = vmatprep.subr.mxu0 0.0
    %675 = vmatpush2.xpose.msra.mxu0 0.0
    %676 = vmatprep.subr.mxu0 0.0
    %677 = vmatpush2.xpose.msra.mxu0 0.0
    %678 = vmatprep.subr.mxu0 0.0
    %679 = vmatpush2.xpose.msra.mxu0 0.0
    %680 = vmatprep.subr.mxu0 0.0
    %681 = vmatpush2.xpose.msra.mxu0 0.0
    %682 = vmatprep.subr.mxu0 0.0
    %683 = vmatpush2.xpose.msra.mxu0 0.0
    %684 = vmatprep.subr.mxu0 0.0
    %685 = vmatpush2.xpose.msra.mxu0 0.0
    %686 = vmatprep.subr.mxu0 0.0
    %687 = vmatpush2.xpose.msra.mxu0 0.0
    %688 = vmatprep.subr.mxu0 0.0
    %689 = vmatpush2.xpose.msra.mxu0 0.0
    %690 = vmatprep.subr.mxu0 0.0
    %691 = vmatpush2.xpose.msra.mxu0 0.0
    %692 = vmatprep.subr.mxu0 0.0
    %693 = vmatpush2.xpose.msra.mxu0 0.0
    %694 = vmatprep.subr.mxu0 0.0
    %695 = vmatpush2.xpose.msra.mxu0 0.0
    %696 = vmatprep.subr.mxu0 0.0
    %697 = vmatpush2.xpose.msra.mxu0 0.0
    %698 = vmatprep.subr.mxu0 0.0
    %699 = vmatpush2.xpose.msra.mxu0 0.0
    %700 = vmatprep.subr.mxu0 0.0
    %701 = vmatpush2.xpose.msra.mxu0 0.0
    %702 = vmatprep.mubr.f32.mxu0 0.0
    %703 = vmatmul.mubr.f32.gmra.mxu0 %v630
    %v704 = vpop.f32.mrf.mxu0
    %v705 = vadd.f32 0.0, %v704
    %v706 = vpop.f32.mrf.mxu0
    %707 = vmatprep.mubr.f32.mxu0 0.0
    %708 = vmatmul.mubr.f32.gmra.mxu0 %v632
    %v709 = vpop.f32.mrf.mxu0
    %v710 = vadd.f32 0.0, %v709
    %v711 = vpop.f32.mrf.mxu0
    %712 = vdwg.mxu0
    %715 = vrot.lane.b32.xlu0 %v240, 112
    %v716 = vpop.permute.xlu0 %715
    %717 = vrot.lane.b32.xlu0 %v245, 112
    %v718 = vpop.permute.xlu0 %717
    %v719 = vsel %vm74, %v240, 0
    %v721 = vsel %vm74, %v245, 0
    %v723 = vsel %vm74, %v716, 0
    %v725 = vsel %vm74, %v718, 0
    %727 = vmatprep.subr.mxu0 0.0
    %728 = vmatpush1.xpose.msra.mxu0 0.0
    %729 = vmatprep.subr.mxu0 0.0
    %730 = vmatpush1.xpose.msra.mxu0 0.0
    %731 = vmatprep.subr.mxu0 0.0
    %732 = vmatpush1.xpose.msra.mxu0 0.0
    %733 = vmatprep.subr.mxu0 0.0
    %734 = vmatpush1.xpose.msra.mxu0 0.0
    %735 = vmatprep.subr.mxu0 0.0
    %736 = vmatpush1.xpose.msra.mxu0 0.0
    %737 = vmatprep.subr.mxu0 0.0
    %738 = vmatpush1.xpose.msra.mxu0 0.0
    %739 = vmatprep.subr.mxu0 0.0
    %740 = vmatpush1.xpose.msra.mxu0 0.0
    %741 = vmatprep.subr.mxu0 0.0
    %742 = vmatpush1.xpose.msra.mxu0 0.0
    %743 = vmatprep.subr.mxu0 0.0
    %744 = vmatpush1.xpose.msra.mxu0 0.0
    %745 = vmatprep.subr.mxu0 0.0
    %746 = vmatpush1.xpose.msra.mxu0 0.0
    %747 = vmatprep.subr.mxu0 0.0
    %748 = vmatpush1.xpose.msra.mxu0 0.0
    %749 = vmatprep.subr.mxu0 0.0
    %750 = vmatpush1.xpose.msra.mxu0 0.0
    %751 = vmatprep.subr.mxu0 0.0
    %752 = vmatpush1.xpose.msra.mxu0 0.0
    %753 = vmatprep.subr.mxu0 0.0
    %754 = vmatpush1.xpose.msra.mxu0 0.0
    %755 = vmatprep.subr.mxu0 0.0
    %756 = vmatpush1.xpose.msra.mxu0 %v725
    %757 = vmatprep.subr.mxu0 0.0
    %758 = vmatpush1.xpose.msra.mxu0 %v723
    %759 = vmatprep.subr.mxu0 0.0
    %760 = vmatpush2.xpose.msra.mxu0 0.0
    %761 = vmatprep.subr.mxu0 0.0
    %762 = vmatpush2.xpose.msra.mxu0 0.0
    %763 = vmatprep.subr.mxu0 0.0
    %764 = vmatpush2.xpose.msra.mxu0 0.0
    %765 = vmatprep.subr.mxu0 0.0
    %766 = vmatpush2.xpose.msra.mxu0 0.0
    %767 = vmatprep.subr.mxu0 0.0
    %768 = vmatpush2.xpose.msra.mxu0 0.0
    %769 = vmatprep.subr.mxu0 0.0
    %770 = vmatpush2.xpose.msra.mxu0 0.0
    %771 = vmatprep.subr.mxu0 0.0
    %772 = vmatpush2.xpose.msra.mxu0 0.0
    %773 = vmatprep.subr.mxu0 0.0
    %774 = vmatpush2.xpose.msra.mxu0 0.0
    %775 = vmatprep.subr.mxu0 0.0
    %776 = vmatpush2.xpose.msra.mxu0 0.0
    %777 = vmatprep.subr.mxu0 0.0
    %778 = vmatpush2.xpose.msra.mxu0 0.0
    %779 = vmatprep.subr.mxu0 0.0
    %780 = vmatpush2.xpose.msra.mxu0 0.0
    %781 = vmatprep.subr.mxu0 0.0
    %782 = vmatpush2.xpose.msra.mxu0 0.0
    %783 = vmatprep.subr.mxu0 0.0
    %784 = vmatpush2.xpose.msra.mxu0 0.0
    %785 = vmatprep.subr.mxu0 0.0
    %786 = vmatpush2.xpose.msra.mxu0 0.0
    %787 = vmatprep.subr.mxu0 0.0
    %788 = vmatpush2.xpose.msra.mxu0 0.0
    %789 = vmatprep.subr.mxu0 0.0
    %790 = vmatpush2.xpose.msra.mxu0 0.0
    %791 = vmatprep.mubr.f32.mxu0 0.0
    %792 = vmatmul.mubr.f32.gmra.mxu0 %v719
    %v793 = vpop.f32.mrf.mxu0
    %v794 = vadd.f32 0.0, %v793
    %v795 = vpop.f32.mrf.mxu0
    %796 = vmatprep.mubr.f32.mxu0 0.0
    %797 = vmatmul.mubr.f32.gmra.mxu0 %v721
    %v798 = vpop.f32.mrf.mxu0
    %v799 = vadd.f32 0.0, %v798
    %v800 = vpop.f32.mrf.mxu0
    %801 = vdwg.mxu0
    %804 = vrot.lane.b32.xlu0 %v250, 112
    %v805 = vpop.permute.xlu0 %804
    %806 = vrot.lane.b32.xlu0 %v255, 112
    %v807 = vpop.permute.xlu0 %806
    %v808 = vsel %vm74, %v250, 0
    %v810 = vsel %vm74, %v255, 0
    %v812 = vsel %vm74, %v805, 0
    %v814 = vsel %vm74, %v807, 0
    %816 = vmatprep.subr.mxu0 0.0
    %817 = vmatpush1.xpose.msra.mxu0 0.0
    %818 = vmatprep.subr.mxu0 0.0
    %819 = vmatpush1.xpose.msra.mxu0 0.0
    %820 = vmatprep.subr.mxu0 0.0
    %821 = vmatpush1.xpose.msra.mxu0 0.0
    %822 = vmatprep.subr.mxu0 0.0
    %823 = vmatpush1.xpose.msra.mxu0 0.0
    %824 = vmatprep.subr.mxu0 0.0
    %825 = vmatpush1.xpose.msra.mxu0 0.0
    %826 = vmatprep.subr.mxu0 0.0
    %827 = vmatpush1.xpose.msra.mxu0 0.0
    %828 = vmatprep.subr.mxu0 0.0
    %829 = vmatpush1.xpose.msra.mxu0 0.0
    %830 = vmatprep.subr.mxu0 0.0
    %831 = vmatpush1.xpose.msra.mxu0 0.0
    %832 = vmatprep.subr.mxu0 0.0
    %833 = vmatpush1.xpose.msra.mxu0 0.0
    %834 = vmatprep.subr.mxu0 0.0
    %835 = vmatpush1.xpose.msra.mxu0 0.0
    %836 = vmatprep.subr.mxu0 0.0
    %837 = vmatpush1.xpose.msra.mxu0 0.0
    %838 = vmatprep.subr.mxu0 0.0
    %839 = vmatpush1.xpose.msra.mxu0 0.0
    %840 = vmatprep.subr.mxu0 0.0
    %841 = vmatpush1.xpose.msra.mxu0 0.0
    %842 = vmatprep.subr.mxu0 0.0
    %843 = vmatpush1.xpose.msra.mxu0 0.0
    %844 = vmatprep.subr.mxu0 0.0
    %845 = vmatpush1.xpose.msra.mxu0 %v814
    %846 = vmatprep.subr.mxu0 0.0
    %847 = vmatpush1.xpose.msra.mxu0 %v812
    %848 = vmatprep.subr.mxu0 0.0
    %849 = vmatpush2.xpose.msra.mxu0 0.0
    %850 = vmatprep.subr.mxu0 0.0
    %851 = vmatpush2.xpose.msra.mxu0 0.0
    %852 = vmatprep.subr.mxu0 0.0
    %853 = vmatpush2.xpose.msra.mxu0 0.0
    %854 = vmatprep.subr.mxu0 0.0
    %855 = vmatpush2.xpose.msra.mxu0 0.0
    %856 = vmatprep.subr.mxu0 0.0
    %857 = vmatpush2.xpose.msra.mxu0 0.0
    %858 = vmatprep.subr.mxu0 0.0
    %859 = vmatpush2.xpose.msra.mxu0 0.0
    %860 = vmatprep.subr.mxu0 0.0
    %861 = vmatpush2.xpose.msra.mxu0 0.0
    %862 = vmatprep.subr.mxu0 0.0
    %863 = vmatpush2.xpose.msra.mxu0 0.0
    %864 = vmatprep.subr.mxu0 0.0
    %865 = vmatpush2.xpose.msra.mxu0 0.0
    %866 = vmatprep.subr.mxu0 0.0
    %867 = vmatpush2.xpose.msra.mxu0 0.0
    %868 = vmatprep.subr.mxu0 0.0
    %869 = vmatpush2.xpose.msra.mxu0 0.0
    %870 = vmatprep.subr.mxu0 0.0
    %871 = vmatpush2.xpose.msra.mxu0 0.0
    %872 = vmatprep.subr.mxu0 0.0
    %873 = vmatpush2.xpose.msra.mxu0 0.0
    %874 = vmatprep.subr.mxu0 0.0
    %875 = vmatpush2.xpose.msra.mxu0 0.0
    %876 = vmatprep.subr.mxu0 0.0
    %877 = vmatpush2.xpose.msra.mxu0 0.0
    %878 = vmatprep.subr.mxu0 0.0
    %879 = vmatpush2.xpose.msra.mxu0 0.0
    %880 = vmatprep.mubr.f32.mxu0 0.0
    %881 = vmatmul.mubr.f32.gmra.mxu0 %v808
    %v882 = vpop.f32.mrf.mxu0
    %v883 = vadd.f32 0.0, %v882
    %v884 = vpop.f32.mrf.mxu0
    %885 = vmatprep.mubr.f32.mxu0 0.0
    %886 = vmatmul.mubr.f32.gmra.mxu0 %v810
    %v887 = vpop.f32.mrf.mxu0
    %v888 = vadd.f32 0.0, %v887
    %v889 = vpop.f32.mrf.mxu0
    %890 = vdwg.mxu0
    %893 = vrot.lane.b32.xlu0 %v260, 112
    %v894 = vpop.permute.xlu0 %893
    %895 = vrot.lane.b32.xlu0 %v265, 112
    %v896 = vpop.permute.xlu0 %895
    %v897 = vsel %vm74, %v260, 0
    %v899 = vsel %vm74, %v265, 0
    %v901 = vsel %vm74, %v894, 0
    %v903 = vsel %vm74, %v896, 0
    %905 = vmatprep.subr.mxu0 0.0
    %906 = vmatpush1.xpose.msra.mxu0 0.0
    %907 = vmatprep.subr.mxu0 0.0
    %908 = vmatpush1.xpose.msra.mxu0 0.0
    %909 = vmatprep.subr.mxu0 0.0
    %910 = vmatpush1.xpose.msra.mxu0 0.0
    %911 = vmatprep.subr.mxu0 0.0
    %912 = vmatpush1.xpose.msra.mxu0 0.0
    %913 = vmatprep.subr.mxu0 0.0
    %914 = vmatpush1.xpose.msra.mxu0 0.0
    %915 = vmatprep.subr.mxu0 0.0
    %916 = vmatpush1.xpose.msra.mxu0 0.0
    %917 = vmatprep.subr.mxu0 0.0
    %918 = vmatpush1.xpose.msra.mxu0 0.0
    %919 = vmatprep.subr.mxu0 0.0
    %920 = vmatpush1.xpose.msra.mxu0 0.0
    %921 = vmatprep.subr.mxu0 0.0
    %922 = vmatpush1.xpose.msra.mxu0 0.0
    %923 = vmatprep.subr.mxu0 0.0
    %924 = vmatpush1.xpose.msra.mxu0 0.0
    %925 = vmatprep.subr.mxu0 0.0
    %926 = vmatpush1.xpose.msra.mxu0 0.0
    %927 = vmatprep.subr.mxu0 0.0
    %928 = vmatpush1.xpose.msra.mxu0 0.0
    %929 = vmatprep.subr.mxu0 0.0
    %930 = vmatpush1.xpose.msra.mxu0 0.0
    %931 = vmatprep.subr.mxu0 0.0
    %932 = vmatpush1.xpose.msra.mxu0 0.0
    %933 = vmatprep.subr.mxu0 0.0
    %934 = vmatpush1.xpose.msra.mxu0 %v903
    %935 = vmatprep.subr.mxu0 0.0
    %936 = vmatpush1.xpose.msra.mxu0 %v901
    %937 = vmatprep.subr.mxu0 0.0
    %938 = vmatpush2.xpose.msra.mxu0 0.0
    %939 = vmatprep.subr.mxu0 0.0
    %940 = vmatpush2.xpose.msra.mxu0 0.0
    %941 = vmatprep.subr.mxu0 0.0
    %942 = vmatpush2.xpose.msra.mxu0 0.0
    %943 = vmatprep.subr.mxu0 0.0
    %944 = vmatpush2.xpose.msra.mxu0 0.0
    %945 = vmatprep.subr.mxu0 0.0
    %946 = vmatpush2.xpose.msra.mxu0 0.0
    %947 = vmatprep.subr.mxu0 0.0
    %948 = vmatpush2.xpose.msra.mxu0 0.0
    %949 = vmatprep.subr.mxu0 0.0
    %950 = vmatpush2.xpose.msra.mxu0 0.0
    %951 = vmatprep.subr.mxu0 0.0
    %952 = vmatpush2.xpose.msra.mxu0 0.0
    %953 = vmatprep.subr.mxu0 0.0
    %954 = vmatpush2.xpose.msra.mxu0 0.0
    %955 = vmatprep.subr.mxu0 0.0
    %956 = vmatpush2.xpose.msra.mxu0 0.0
    %957 = vmatprep.subr.mxu0 0.0
    %958 = vmatpush2.xpose.msra.mxu0 0.0
    %959 = vmatprep.subr.mxu0 0.0
    %960 = vmatpush2.xpose.msra.mxu0 0.0
    %961 = vmatprep.subr.mxu0 0.0
    %962 = vmatpush2.xpose.msra.mxu0 0.0
    %963 = vmatprep.subr.mxu0 0.0
    %964 = vmatpush2.xpose.msra.mxu0 0.0
    %965 = vmatprep.subr.mxu0 0.0
    %966 = vmatpush2.xpose.msra.mxu0 0.0
    %967 = vmatprep.subr.mxu0 0.0
    %968 = vmatpush2.xpose.msra.mxu0 0.0
    %969 = vmatprep.mubr.f32.mxu0 0.0
    %970 = vmatmul.mubr.f32.gmra.mxu0 %v897
    %v971 = vpop.f32.mrf.mxu0
    %v972 = vadd.f32 0.0, %v971
    %v973 = vpop.f32.mrf.mxu0
    %974 = vmatprep.mubr.f32.mxu0 0.0
    %975 = vmatmul.mubr.f32.gmra.mxu0 %v899
    %v976 = vpop.f32.mrf.mxu0
    %v977 = vadd.f32 0.0, %v976
    %v978 = vpop.f32.mrf.mxu0
    %979 = vdwg.mxu0
    %v980 = vmul.f32 %v349, 0.25
    %v981 = vmul.f32 %v354, 0.25
    %v982 = vmul.f32 %v438, 0.25
    %v983 = vmul.f32 %v443, 0.25
    %v984 = vmul.f32 %v527, 0.25
    %v985 = vmul.f32 %v532, 0.25
    %v986 = vmul.f32 %v616, 0.25
    %v987 = vmul.f32 %v621, 0.25
    %v988 = vmul.f32 %v705, 0.25
    %v989 = vmul.f32 %v710, 0.25
    %v990 = vmul.f32 %v794, 0.25
    %v991 = vmul.f32 %v799, 0.25
    %v992 = vmul.f32 %v883, 0.25
    %v993 = vmul.f32 %v888, 0.25
    %v994 = vmul.f32 %v972, 0.25
    %v995 = vmul.f32 %v977, 0.25
    %v1012 = vcombine.high %v980, %v980
    %v1013 = vcombine.high %v981, %v981
    %v1014 = vcombine.high %v982, %v982
    %v1015 = vcombine.high %v983, %v983
    %v1016 = vcombine.high %v984, %v984
    %v1017 = vcombine.high %v985, %v985
    %v1018 = vcombine.high %v986, %v986
    %v1019 = vcombine.high %v987, %v987
    %v1020 = vcombine.high %v988, %v988
    %v1021 = vcombine.high %v989, %v989
    %v1022 = vcombine.high %v990, %v990
    %v1023 = vcombine.high %v991, %v991
    %v1024 = vcombine.high %v992, %v992
    %v1025 = vcombine.high %v993, %v993
    %v1026 = vcombine.high %v994, %v994
    %v1027 = vcombine.high %v995, %v995
    %vm1044 = vcmask 125952
    %v1045 = vsel %vm1044, %v980, -inf
    %v1046 = vrot.slane %v1045, 4
    %v1047 = vmax.f32 %v1045, %v1046
    %v1048 = vrot.slane %v1047, 2
    %v1049 = vmax.f32 %v1047, %v1048
    %v1050 = vrot.slane %v1049, 1
    %v1051 = vmax.f32 %v1049, %v1050
    %v1052 = vsel %vm1044, %v1012, -inf
    %v1053 = vrot.slane %v1052, 4
    %v1054 = vmax.f32 %v1052, %v1053
    %v1055 = vrot.slane %v1054, 2
    %v1056 = vmax.f32 %v1054, %v1055
    %v1057 = vrot.slane %v1056, 1
    %v1058 = vmax.f32 %v1056, %v1057
    %v1059 = vsel %vm1044, %v981, -inf
    %v1060 = vrot.slane %v1059, 4
    %v1061 = vmax.f32 %v1059, %v1060
    %v1062 = vrot.slane %v1061, 2
    %v1063 = vmax.f32 %v1061, %v1062
    %v1064 = vrot.slane %v1063, 1
    %v1065 = vmax.f32 %v1063, %v1064
    %v1066 = vsel %vm1044, %v1013, -inf
    %v1067 = vrot.slane %v1066, 4
    %v1068 = vmax.f32 %v1066, %v1067
    %v1069 = vrot.slane %v1068, 2
    %v1070 = vmax.f32 %v1068, %v1069
    %v1071 = vrot.slane %v1070, 1
    %v1072 = vmax.f32 %v1070, %v1071
    %v1073 = vsel %vm1044, %v982, -inf
    %v1074 = vrot.slane %v1073, 4
    %v1075 = vmax.f32 %v1073, %v1074
    %v1076 = vrot.slane %v1075, 2
    %v1077 = vmax.f32 %v1075, %v1076
    %v1078 = vrot.slane %v1077, 1
    %v1079 = vmax.f32 %v1077, %v1078
    %v1080 = vsel %vm1044, %v1014, -inf
    %v1081 = vrot.slane %v1080, 4
    %v1082 = vmax.f32 %v1080, %v1081
    %v1083 = vrot.slane %v1082, 2
    %v1084 = vmax.f32 %v1082, %v1083
    %v1085 = vrot.slane %v1084, 1
    %v1086 = vmax.f32 %v1084, %v1085
    %v1087 = vsel %vm1044, %v983, -inf
    %v1088 = vrot.slane %v1087, 4
    %v1089 = vmax.f32 %v1087, %v1088
    %v1090 = vrot.slane %v1089, 2
    %v1091 = vmax.f32 %v1089, %v1090
    %v1092 = vrot.slane %v1091, 1
    %v1093 = vmax.f32 %v1091, %v1092
    %v1094 = vsel %vm1044, %v1015, -inf
    %v1095 = vrot.slane %v1094, 4
    %v1096 = vmax.f32 %v1094, %v1095
    %v1097 = vrot.slane %v1096, 2
    %v1098 = vmax.f32 %v1096, %v1097
    %v1099 = vrot.slane %v1098, 1
    %v1100 = vmax.f32 %v1098, %v1099
    %v1101 = vsel %vm1044, %v984, -inf
    %v1102 = vrot.slane %v1101, 4
    %v1103 = vmax.f32 %v1101, %v1102
    %v1104 = vrot.slane %v1103, 2
    %v1105 = vmax.f32 %v1103, %v1104
    %v1106 = vrot.slane %v1105, 1
    %v1107 = vmax.f32 %v1105, %v1106
    %v1108 = vsel %vm1044, %v1016, -inf
    %v1109 = vrot.slane %v1108, 4
    %v1110 = vmax.f32 %v1108, %v1109
    %v1111 = vrot.slane %v1110, 2
    %v1112 = vmax.f32 %v1110, %v1111
    %v1113 = vrot.slane %v1112, 1
    %v1114 = vmax.f32 %v1112, %v1113
    %v1115 = vsel %vm1044, %v985, -inf
    %v1116 = vrot.slane %v1115, 4
    %v1117 = vmax.f32 %v1115, %v1116
    %v1118 = vrot.slane %v1117, 2
    %v1119 = vmax.f32 %v1117, %v1118
    %v1120 = vrot.slane %v1119, 1
    %v1121 = vmax.f32 %v1119, %v1120
    %v1122 = vsel %vm1044, %v1017, -inf
    %v1123 = vrot.slane %v1122, 4
    %v1124 = vmax.f32 %v1122, %v1123
    %v1125 = vrot.slane %v1124, 2
    %v1126 = vmax.f32 %v1124, %v1125
    %v1127 = vrot.slane %v1126, 1
    %v1128 = vmax.f32 %v1126, %v1127
    %v1129 = vsel %vm1044, %v986, -inf
    %v1130 = vrot.slane %v1129, 4
    %v1131 = vmax.f32 %v1129, %v1130
    %v1132 = vrot.slane %v1131, 2
    %v1133 = vmax.f32 %v1131, %v1132
    %v1134 = vrot.slane %v1133, 1
    %v1135 = vmax.f32 %v1133, %v1134
    %v1136 = vsel %vm1044, %v1018, -inf
    %v1137 = vrot.slane %v1136, 4
    %v1138 = vmax.f32 %v1136, %v1137
    %v1139 = vrot.slane %v1138, 2
    %v1140 = vmax.f32 %v1138, %v1139
    %v1141 = vrot.slane %v1140, 1
    %v1142 = vmax.f32 %v1140, %v1141
    %v1143 = vsel %vm1044, %v987, -inf
    %v1144 = vrot.slane %v1143, 4
    %v1145 = vmax.f32 %v1143, %v1144
    %v1146 = vrot.slane %v1145, 2
    %v1147 = vmax.f32 %v1145, %v1146
    %v1148 = vrot.slane %v1147, 1
    %v1149 = vmax.f32 %v1147, %v1148
    %v1150 = vsel %vm1044, %v1019, -inf
    %v1151 = vrot.slane %v1150, 4
    %v1152 = vmax.f32 %v1150, %v1151
    %v1153 = vrot.slane %v1152, 2
    %v1154 = vmax.f32 %v1152, %v1153
    %v1155 = vrot.slane %v1154, 1
    %v1156 = vmax.f32 %v1154, %v1155
    %v1157 = vsel %vm1044, %v988, -inf
    %v1158 = vrot.slane %v1157, 4
    %v1159 = vmax.f32 %v1157, %v1158
    %v1160 = vrot.slane %v1159, 2
    %v1161 = vmax.f32 %v1159, %v1160
    %v1162 = vrot.slane %v1161, 1
    %v1163 = vmax.f32 %v1161, %v1162
    %v1164 = vsel %vm1044, %v1020, -inf
    %v1165 = vrot.slane %v1164, 4
    %v1166 = vmax.f32 %v1164, %v1165
    %v1167 = vrot.slane %v1166, 2
    %v1168 = vmax.f32 %v1166, %v1167
    %v1169 = vrot.slane %v1168, 1
    %v1170 = vmax.f32 %v1168, %v1169
    %v1171 = vsel %vm1044, %v989, -inf
    %v1172 = vrot.slane %v1171, 4
    %v1173 = vmax.f32 %v1171, %v1172
    %v1174 = vrot.slane %v1173, 2
    %v1175 = vmax.f32 %v1173, %v1174
    %v1176 = vrot.slane %v1175, 1
    %v1177 = vmax.f32 %v1175, %v1176
    %v1178 = vsel %vm1044, %v1021, -inf
    %v1179 = vrot.slane %v1178, 4
    %v1180 = vmax.f32 %v1178, %v1179
    %v1181 = vrot.slane %v1180, 2
    %v1182 = vmax.f32 %v1180, %v1181
    %v1183 = vrot.slane %v1182, 1
    %v1184 = vmax.f32 %v1182, %v1183
    %v1185 = vsel %vm1044, %v990, -inf
    %v1186 = vrot.slane %v1185, 4
    %v1187 = vmax.f32 %v1185, %v1186
    %v1188 = vrot.slane %v1187, 2
    %v1189 = vmax.f32 %v1187, %v1188
    %v1190 = vrot.slane %v1189, 1
    %v1191 = vmax.f32 %v1189, %v1190
    %v1192 = vsel %vm1044, %v1022, -inf
    %v1193 = vrot.slane %v1192, 4
    %v1194 = vmax.f32 %v1192, %v1193
    %v1195 = vrot.slane %v1194, 2
    %v1196 = vmax.f32 %v1194, %v1195
    %v1197 = vrot.slane %v1196, 1
    %v1198 = vmax.f32 %v1196, %v1197
    %v1199 = vsel %vm1044, %v991, -inf
    %v1200 = vrot.slane %v1199, 4
    %v1201 = vmax.f32 %v1199, %v1200
    %v1202 = vrot.slane %v1201, 2
    %v1203 = vmax.f32 %v1201, %v1202
    %v1204 = vrot.slane %v1203, 1
    %v1205 = vmax.f32 %v1203, %v1204
    %v1206 = vsel %vm1044, %v1023, -inf
    %v1207 = vrot.slane %v1206, 4
    %v1208 = vmax.f32 %v1206, %v1207
    %v1209 = vrot.slane %v1208, 2
    %v1210 = vmax.f32 %v1208, %v1209
    %v1211 = vrot.slane %v1210, 1
    %v1212 = vmax.f32 %v1210, %v1211
    %v1213 = vsel %vm1044, %v992, -inf
    %v1214 = vrot.slane %v1213, 4
    %v1215 = vmax.f32 %v1213, %v1214
    %v1216 = vrot.slane %v1215, 2
    %v1217 = vmax.f32 %v1215, %v1216
    %v1218 = vrot.slane %v1217, 1
    %v1219 = vmax.f32 %v1217, %v1218
    %v1220 = vsel %vm1044, %v1024, -inf
    %v1221 = vrot.slane %v1220, 4
    %v1222 = vmax.f32 %v1220, %v1221
    %v1223 = vrot.slane %v1222, 2
    %v1224 = vmax.f32 %v1222, %v1223
    %v1225 = vrot.slane %v1224, 1
    %v1226 = vmax.f32 %v1224, %v1225
    %v1227 = vsel %vm1044, %v993, -inf
    %v1228 = vrot.slane %v1227, 4
    %v1229 = vmax.f32 %v1227, %v1228
    %v1230 = vrot.slane %v1229, 2
    %v1231 = vmax.f32 %v1229, %v1230
    %v1232 = vrot.slane %v1231, 1
    %v1233 = vmax.f32 %v1231, %v1232
    %v1234 = vsel %vm1044, %v1025, -inf
    %v1235 = vrot.slane %v1234, 4
    %v1236 = vmax.f32 %v1234, %v1235
    %v1237 = vrot.slane %v1236, 2
    %v1238 = vmax.f32 %v1236, %v1237
    %v1239 = vrot.slane %v1238, 1
    %v1240 = vmax.f32 %v1238, %v1239
    %v1241 = vsel %vm1044, %v994, -inf
    %v1242 = vrot.slane %v1241, 4
    %v1243 = vmax.f32 %v1241, %v1242
    %v1244 = vrot.slane %v1243, 2
    %v1245 = vmax.f32 %v1243, %v1244
    %v1246 = vrot.slane %v1245, 1
    %v1247 = vmax.f32 %v1245, %v1246
    %v1248 = vsel %vm1044, %v1026, -inf
    %v1249 = vrot.slane %v1248, 4
    %v1250 = vmax.f32 %v1248, %v1249
    %v1251 = vrot.slane %v1250, 2
    %v1252 = vmax.f32 %v1250, %v1251
    %v1253 = vrot.slane %v1252, 1
    %v1254 = vmax.f32 %v1252, %v1253
    %v1255 = vsel %vm1044, %v995, -inf
    %v1256 = vrot.slane %v1255, 4
    %v1257 = vmax.f32 %v1255, %v1256
    %v1258 = vrot.slane %v1257, 2
    %v1259 = vmax.f32 %v1257, %v1258
    %v1260 = vrot.slane %v1259, 1
    %v1261 = vmax.f32 %v1259, %v1260
    %v1262 = vsel %vm1044, %v1027, -inf
    %v1263 = vrot.slane %v1262, 4
    %v1264 = vmax.f32 %v1262, %v1263
    %v1265 = vrot.slane %v1264, 2
    %v1266 = vmax.f32 %v1264, %v1265
    %v1267 = vrot.slane %v1266, 1
    %v1268 = vmax.f32 %v1266, %v1267
    %v1269 = vsub.f32 %v980, %v1051
    %v1270 = vsub.f32 %v1012, %v1058
    %v1271 = vsub.f32 %v981, %v1065
    %v1272 = vsub.f32 %v1013, %v1072
    %v1273 = vsub.f32 %v982, %v1079
    %v1274 = vsub.f32 %v1014, %v1086
    %v1275 = vsub.f32 %v983, %v1093
    %v1276 = vsub.f32 %v1015, %v1100
    %v1277 = vsub.f32 %v984, %v1107
    %v1278 = vsub.f32 %v1016, %v1114
    %v1279 = vsub.f32 %v985, %v1121
    %v1280 = vsub.f32 %v1017, %v1128
    %v1281 = vsub.f32 %v986, %v1135
    %v1282 = vsub.f32 %v1018, %v1142
    %v1283 = vsub.f32 %v987, %v1149
    %v1284 = vsub.f32 %v1019, %v1156
    %v1285 = vsub.f32 %v988, %v1163
    %v1286 = vsub.f32 %v1020, %v1170
    %v1287 = vsub.f32 %v989, %v1177
    %v1288 = vsub.f32 %v1021, %v1184
    %v1289 = vsub.f32 %v990, %v1191
    %v1290 = vsub.f32 %v1022, %v1198
    %v1291 = vsub.f32 %v991, %v1205
    %v1292 = vsub.f32 %v1023, %v1212
    %v1293 = vsub.f32 %v992, %v1219
    %v1294 = vsub.f32 %v1024, %v1226
    %v1295 = vsub.f32 %v993, %v1233
    %v1296 = vsub.f32 %v1025, %v1240
    %v1297 = vsub.f32 %v994, %v1247
    %v1298 = vsub.f32 %v1026, %v1254
    %v1299 = vsub.f32 %v995, %v1261
    %v1300 = vsub.f32 %v1027, %v1268
    %v1301 = vmul.f32 %v1269, 1.442695
    %v1302 = vpow.pop %v1301
    %v1303 = vmul.f32 %v1270, 1.442695
    %v1304 = vpow.pop %v1303
    %v1305 = vmul.f32 %v1271, 1.442695
    %v1306 = vpow.pop %v1305
    %v1307 = vmul.f32 %v1272, 1.442695
    %v1308 = vpow.pop %v1307
    %v1309 = vmul.f32 %v1273, 1.442695
    %v1310 = vpow.pop %v1309
    %v1311 = vmul.f32 %v1274, 1.442695
    %v1312 = vpow.pop %v1311
    %v1313 = vmul.f32 %v1275, 1.442695
    %v1314 = vpow.pop %v1313
    %v1315 = vmul.f32 %v1276, 1.442695
    %v1316 = vpow.pop %v1315
    %v1317 = vmul.f32 %v1277, 1.442695
    %v1318 = vpow.pop %v1317
    %v1319 = vmul.f32 %v1278, 1.442695
    %v1320 = vpow.pop %v1319
    %v1321 = vmul.f32 %v1279, 1.442695
    %v1322 = vpow.pop %v1321
    %v1323 = vmul.f32 %v1280, 1.442695
    %v1324 = vpow.pop %v1323
    %v1325 = vmul.f32 %v1281, 1.442695
    %v1326 = vpow.pop %v1325
    %v1327 = vmul.f32 %v1282, 1.442695
    %v1328 = vpow.pop %v1327
    %v1329 = vmul.f32 %v1283, 1.442695
    %v1330 = vpow.pop %v1329
    %v1331 = vmul.f32 %v1284, 1.442695
    %v1332 = vpow.pop %v1331
    %v1333 = vmul.f32 %v1285, 1.442695
    %v1334 = vpow.pop %v1333
    %v1335 = vmul.f32 %v1286, 1.442695
    %v1336 = vpow.pop %v1335
    %v1337 = vmul.f32 %v1287, 1.442695
    %v1338 = vpow.pop %v1337
    %v1339 = vmul.f32 %v1288, 1.442695
    %v1340 = vpow.pop %v1339
    %v1341 = vmul.f32 %v1289, 1.442695
    %v1342 = vpow.pop %v1341
    %v1343 = vmul.f32 %v1290, 1.442695
    %v1344 = vpow.pop %v1343
    %v1345 = vmul.f32 %v1291, 1.442695
    %v1346 = vpow.pop %v1345
    %v1347 = vmul.f32 %v1292, 1.442695
    %v1348 = vpow.pop %v1347
    %v1349 = vmul.f32 %v1293, 1.442695
    %v1350 = vpow.pop %v1349
    %v1351 = vmul.f32 %v1294, 1.442695
    %v1352 = vpow.pop %v1351
    %v1353 = vmul.f32 %v1295, 1.442695
    %v1354 = vpow.pop %v1353
    %v1355 = vmul.f32 %v1296, 1.442695
    %v1356 = vpow.pop %v1355
    %v1357 = vmul.f32 %v1297, 1.442695
    %v1358 = vpow.pop %v1357
    %v1359 = vmul.f32 %v1298, 1.442695
    %v1360 = vpow.pop %v1359
    %v1361 = vmul.f32 %v1299, 1.442695
    %v1362 = vpow.pop %v1361
    %v1363 = vmul.f32 %v1300, 1.442695
    %v1364 = vpow.pop %v1363
    %v1365 = vsel %vm1044, %v1302, 0.0
    %v1366 = vrot.slane %v1365, 4
    %v1367 = vadd.f32 %v1365, %v1366
    %v1368 = vrot.slane %v1367, 2
    %v1369 = vadd.f32 %v1367, %v1368
    %v1370 = vrot.slane %v1369, 1
    %v1371 = vadd.f32 %v1369, %v1370
    %v1372 = vsel %vm1044, %v1304, 0.0
    %v1373 = vrot.slane %v1372, 4
    %v1374 = vadd.f32 %v1372, %v1373
    %v1375 = vrot.slane %v1374, 2
    %v1376 = vadd.f32 %v1374, %v1375
    %v1377 = vrot.slane %v1376, 1
    %v1378 = vadd.f32 %v1376, %v1377
    %v1379 = vsel %vm1044, %v1306, 0.0
    %v1380 = vrot.slane %v1379, 4
    %v1381 = vadd.f32 %v1379, %v1380
    %v1382 = vrot.slane %v1381, 2
    %v1383 = vadd.f32 %v1381, %v1382
    %v1384 = vrot.slane %v1383, 1
    %v1385 = vadd.f32 %v1383, %v1384
    %v1386 = vsel %vm1044, %v1308, 0.0
    %v1387 = vrot.slane %v1386, 4
    %v1388 = vadd.f32 %v1386, %v1387
    %v1389 = vrot.slane %v1388, 2
    %v1390 = vadd.f32 %v1388, %v1389
    %v1391 = vrot.slane %v1390, 1
    %v1392 = vadd.f32 %v1390, %v1391
    %v1393 = vsel %vm1044, %v1310, 0.0
    %v1394 = vrot.slane %v1393, 4
    %v1395 = vadd.f32 %v1393, %v1394
    %v1396 = vrot.slane %v1395, 2
    %v1397 = vadd.f32 %v1395, %v1396
    %v1398 = vrot.slane %v1397, 1
    %v1399 = vadd.f32 %v1397, %v1398
    %v1400 = vsel %vm1044, %v1312, 0.0
    %v1401 = vrot.slane %v1400, 4
    %v1402 = vadd.f32 %v1400, %v1401
    %v1403 = vrot.slane %v1402, 2
    %v1404 = vadd.f32 %v1402, %v1403
    %v1405 = vrot.slane %v1404, 1
    %v1406 = vadd.f32 %v1404, %v1405
    %v1407 = vsel %vm1044, %v1314, 0.0
    %v1408 = vrot.slane %v1407, 4
    %v1409 = vadd.f32 %v1407, %v1408
    %v1410 = vrot.slane %v1409, 2
    %v1411 = vadd.f32 %v1409, %v1410
    %v1412 = vrot.slane %v1411, 1
    %v1413 = vadd.f32 %v1411, %v1412
    %v1414 = vsel %vm1044, %v1316, 0.0
    %v1415 = vrot.slane %v1414, 4
    %v1416 = vadd.f32 %v1414, %v1415
    %v1417 = vrot.slane %v1416, 2
    %v1418 = vadd.f32 %v1416, %v1417
    %v1419 = vrot.slane %v1418, 1
    %v1420 = vadd.f32 %v1418, %v1419
    %v1421 = vsel %vm1044, %v1318, 0.0
    %v1422 = vrot.slane %v1421, 4
    %v1423 = vadd.f32 %v1421, %v1422
    %v1424 = vrot.slane %v1423, 2
    %v1425 = vadd.f32 %v1423, %v1424
    %v1426 = vrot.slane %v1425, 1
    %v1427 = vadd.f32 %v1425, %v1426
    %v1428 = vsel %vm1044, %v1320, 0.0
    %v1429 = vrot.slane %v1428, 4
    %v1430 = vadd.f32 %v1428, %v1429
    %v1431 = vrot.slane %v1430, 2
    %v1432 = vadd.f32 %v1430, %v1431
    %v1433 = vrot.slane %v1432, 1
    %v1434 = vadd.f32 %v1432, %v1433
    %v1435 = vsel %vm1044, %v1322, 0.0
    %v1436 = vrot.slane %v1435, 4
    %v1437 = vadd.f32 %v1435, %v1436
    %v1438 = vrot.slane %v1437, 2
    %v1439 = vadd.f32 %v1437, %v1438
    %v1440 = vrot.slane %v1439, 1
    %v1441 = vadd.f32 %v1439, %v1440
    %v1442 = vsel %vm1044, %v1324, 0.0
    %v1443 = vrot.slane %v1442, 4
    %v1444 = vadd.f32 %v1442, %v1443
    %v1445 = vrot.slane %v1444, 2
    %v1446 = vadd.f32 %v1444, %v1445
    %v1447 = vrot.slane %v1446, 1
    %v1448 = vadd.f32 %v1446, %v1447
    %v1449 = vsel %vm1044, %v1326, 0.0
    %v1450 = vrot.slane %v1449, 4
    %v1451 = vadd.f32 %v1449, %v1450
    %v1452 = vrot.slane %v1451, 2
    %v1453 = vadd.f32 %v1451, %v1452
    %v1454 = vrot.slane %v1453, 1
    %v1455 = vadd.f32 %v1453, %v1454
    %v1456 = vsel %vm1044, %v1328, 0.0
    %v1457 = vrot.slane %v1456, 4
    %v1458 = vadd.f32 %v1456, %v1457
    %v1459 = vrot.slane %v1458, 2
    %v1460 = vadd.f32 %v1458, %v1459
    %v1461 = vrot.slane %v1460, 1
    %v1462 = vadd.f32 %v1460, %v1461
    %v1463 = vsel %vm1044, %v1330, 0.0
    %v1464 = vrot.slane %v1463, 4
    %v1465 = vadd.f32 %v1463, %v1464
    %v1466 = vrot.slane %v1465, 2
    %v1467 = vadd.f32 %v1465, %v1466
    %v1468 = vrot.slane %v1467, 1
    %v1469 = vadd.f32 %v1467, %v1468
    %v1470 = vsel %vm1044, %v1332, 0.0
    %v1471 = vrot.slane %v1470, 4
    %v1472 = vadd.f32 %v1470, %v1471
    %v1473 = vrot.slane %v1472, 2
    %v1474 = vadd.f32 %v1472, %v1473
    %v1475 = vrot.slane %v1474, 1
    %v1476 = vadd.f32 %v1474, %v1475
    %v1477 = vsel %vm1044, %v1334, 0.0
    %v1478 = vrot.slane %v1477, 4
    %v1479 = vadd.f32 %v1477, %v1478
    %v1480 = vrot.slane %v1479, 2
    %v1481 = vadd.f32 %v1479, %v1480
    %v1482 = vrot.slane %v1481, 1
    %v1483 = vadd.f32 %v1481, %v1482
    %v1484 = vsel %vm1044, %v1336, 0.0
    %v1485 = vrot.slane %v1484, 4
    %v1486 = vadd.f32 %v1484, %v1485
    %v1487 = vrot.slane %v1486, 2
    %v1488 = vadd.f32 %v1486, %v1487
    %v1489 = vrot.slane %v1488, 1
    %v1490 = vadd.f32 %v1488, %v1489
    %v1491 = vsel %vm1044, %v1338, 0.0
    %v1492 = vrot.slane %v1491, 4
    %v1493 = vadd.f32 %v1491, %v1492
    %v1494 = vrot.slane %v1493, 2
    %v1495 = vadd.f32 %v1493, %v1494
    %v1496 = vrot.slane %v1495, 1
    %v1497 = vadd.f32 %v1495, %v1496
    %v1498 = vsel %vm1044, %v1340, 0.0
    %v1499 = vrot.slane %v1498, 4
    %v1500 = vadd.f32 %v1498, %v1499
    %v1501 = vrot.slane %v1500, 2
    %v1502 = vadd.f32 %v1500, %v1501
    %v1503 = vrot.slane %v1502, 1
    %v1504 = vadd.f32 %v1502, %v1503
    %v1505 = vsel %vm1044, %v1342, 0.0
    %v1506 = vrot.slane %v1505, 4
    %v1507 = vadd.f32 %v1505, %v1506
    %v1508 = vrot.slane %v1507, 2
    %v1509 = vadd.f32 %v1507, %v1508
    %v1510 = vrot.slane %v1509, 1
    %v1511 = vadd.f32 %v1509, %v1510
    %v1512 = vsel %vm1044, %v1344, 0.0
    %v1513 = vrot.slane %v1512, 4
    %v1514 = vadd.f32 %v1512, %v1513
    %v1515 = vrot.slane %v1514, 2
    %v1516 = vadd.f32 %v1514, %v1515
    %v1517 = vrot.slane %v1516, 1
    %v1518 = vadd.f32 %v1516, %v1517
    %v1519 = vsel %vm1044, %v1346, 0.0
    %v1520 = vrot.slane %v1519, 4
    %v1521 = vadd.f32 %v1519, %v1520
    %v1522 = vrot.slane %v1521, 2
    %v1523 = vadd.f32 %v1521, %v1522
    %v1524 = vrot.slane %v1523, 1
    %v1525 = vadd.f32 %v1523, %v1524
    %v1526 = vsel %vm1044, %v1348, 0.0
    %v1527 = vrot.slane %v1526, 4
    %v1528 = vadd.f32 %v1526, %v1527
    %v1529 = vrot.slane %v1528, 2
    %v1530 = vadd.f32 %v1528, %v1529
    %v1531 = vrot.slane %v1530, 1
    %v1532 = vadd.f32 %v1530, %v1531
    %v1533 = vsel %vm1044, %v1350, 0.0
    %v1534 = vrot.slane %v1533, 4
    %v1535 = vadd.f32 %v1533, %v1534
    %v1536 = vrot.slane %v1535, 2
    %v1537 = vadd.f32 %v1535, %v1536
    %v1538 = vrot.slane %v1537, 1
    %v1539 = vadd.f32 %v1537, %v1538
    %v1540 = vsel %vm1044, %v1352, 0.0
    %v1541 = vrot.slane %v1540, 4
    %v1542 = vadd.f32 %v1540, %v1541
    %v1543 = vrot.slane %v1542, 2
    %v1544 = vadd.f32 %v1542, %v1543
    %v1545 = vrot.slane %v1544, 1
    %v1546 = vadd.f32 %v1544, %v1545
    %v1547 = vsel %vm1044, %v1354, 0.0
    %v1548 = vrot.slane %v1547, 4
    %v1549 = vadd.f32 %v1547, %v1548
    %v1550 = vrot.slane %v1549, 2
    %v1551 = vadd.f32 %v1549, %v1550
    %v1552 = vrot.slane %v1551, 1
    %v1553 = vadd.f32 %v1551, %v1552
    %v1554 = vsel %vm1044, %v1356, 0.0
    %v1555 = vrot.slane %v1554, 4
    %v1556 = vadd.f32 %v1554, %v1555
    %v1557 = vrot.slane %v1556, 2
    %v1558 = vadd.f32 %v1556, %v1557
    %v1559 = vrot.slane %v1558, 1
    %v1560 = vadd.f32 %v1558, %v1559
    %v1561 = vsel %vm1044, %v1358, 0.0
    %v1562 = vrot.slane %v1561, 4
    %v1563 = vadd.f32 %v1561, %v1562
    %v1564 = vrot.slane %v1563, 2
    %v1565 = vadd.f32 %v1563, %v1564
    %v1566 = vrot.slane %v1565, 1
    %v1567 = vadd.f32 %v1565, %v1566
    %v1568 = vsel %vm1044, %v1360, 0.0
    %v1569 = vrot.slane %v1568, 4
    %v1570 = vadd.f32 %v1568, %v1569
    %v1571 = vrot.slane %v1570, 2
    %v1572 = vadd.f32 %v1570, %v1571
    %v1573 = vrot.slane %v1572, 1
    %v1574 = vadd.f32 %v1572, %v1573
    %v1575 = vsel %vm1044, %v1362, 0.0
    %v1576 = vrot.slane %v1575, 4
    %v1577 = vadd.f32 %v1575, %v1576
    %v1578 = vrot.slane %v1577, 2
    %v1579 = vadd.f32 %v1577, %v1578
    %v1580 = vrot.slane %v1579, 1
    %v1581 = vadd.f32 %v1579, %v1580
    %v1582 = vsel %vm1044, %v1364, 0.0
    %v1583 = vrot.slane %v1582, 4
    %v1584 = vadd.f32 %v1582, %v1583
    %v1585 = vrot.slane %v1584, 2
    %v1586 = vadd.f32 %v1584, %v1585
    %v1587 = vrot.slane %v1586, 1
    %v1588 = vadd.f32 %v1586, %v1587
    %v1589 = vrcp.pop %v1371
    %v1590 = vrcp.pop %v1378
    %v1591 = vrcp.pop %v1385
    %v1592 = vrcp.pop %v1392
    %v1593 = vrcp.pop %v1399
    %v1594 = vrcp.pop %v1406
    %v1595 = vrcp.pop %v1413
    %v1596 = vrcp.pop %v1420
    %v1597 = vrcp.pop %v1427
    %v1598 = vrcp.pop %v1434
    %v1599 = vrcp.pop %v1441
    %v1600 = vrcp.pop %v1448
    %v1601 = vrcp.pop %v1455
    %v1602 = vrcp.pop %v1462
    %v1603 = vrcp.pop %v1469
    %v1604 = vrcp.pop %v1476
    %v1605 = vrcp.pop %v1483
    %v1606 = vrcp.pop %v1490
    %v1607 = vrcp.pop %v1497
    %v1608 = vrcp.pop %v1504
    %v1609 = vrcp.pop %v1511
    %v1610 = vrcp.pop %v1518
    %v1611 = vrcp.pop %v1525
    %v1612 = vrcp.pop %v1532
    %v1613 = vrcp.pop %v1539
    %v1614 = vrcp.pop %v1546
    %v1615 = vrcp.pop %v1553
    %v1616 = vrcp.pop %v1560
    %v1617 = vrcp.pop %v1567
    %v1618 = vrcp.pop %v1574
    %v1619 = vrcp.pop %v1581
    %v1620 = vrcp.pop %v1588
    %v1621 = vmul.f32 %v1302, %v1589
    %v1622 = vmul.f32 %v1304, %v1590
    %v1623 = vmul.f32 %v1306, %v1591
    %v1624 = vmul.f32 %v1308, %v1592
    %v1625 = vmul.f32 %v1310, %v1593
    %v1626 = vmul.f32 %v1312, %v1594
    %v1627 = vmul.f32 %v1314, %v1595
    %v1628 = vmul.f32 %v1316, %v1596
    %v1629 = vmul.f32 %v1318, %v1597
    %v1630 = vmul.f32 %v1320, %v1598
    %v1631 = vmul.f32 %v1322, %v1599
    %v1632 = vmul.f32 %v1324, %v1600
    %v1633 = vmul.f32 %v1326, %v1601
    %v1634 = vmul.f32 %v1328, %v1602
    %v1635 = vmul.f32 %v1330, %v1603
    %v1636 = vmul.f32 %v1332, %v1604
    %v1637 = vmul.f32 %v1334, %v1605
    %v1638 = vmul.f32 %v1336, %v1606
    %v1639 = vmul.f32 %v1338, %v1607
    %v1640 = vmul.f32 %v1340, %v1608
    %v1641 = vmul.f32 %v1342, %v1609
    %v1642 = vmul.f32 %v1344, %v1610
    %v1643 = vmul.f32 %v1346, %v1611
    %v1644 = vmul.f32 %v1348, %v1612
    %v1645 = vmul.f32 %v1350, %v1613
    %v1646 = vmul.f32 %v1352, %v1614
    %v1647 = vmul.f32 %v1354, %v1615
    %v1648 = vmul.f32 %v1356, %v1616
    %v1649 = vmul.f32 %v1358, %v1617
    %v1650 = vmul.f32 %v1360, %v1618
    %v1651 = vmul.f32 %v1362, %v1619
    %v1652 = vmul.f32 %v1364, %v1620
    %v1657 = vcombine.low %v1621, %v1622
    %v1658 = vcombine.low %v1623, %v1624
    %1659 = vrot.lane.b32.xlu0 %v190, 96
    %v1660 = vpop.permute.xlu0 %1659
    %1661 = vrot.lane.b32.xlu0 %v195, 96
    %v1662 = vpop.permute.xlu0 %1661
    %v1665 = vsel %vm74, %v1657, 0
    %v1667 = vsel %vm74, %v1658, 0
    %1669 = vmatprep.subr.mxu0 0.0
    %1670 = vmatpush1.msra.mxu0 0.0
    %1671 = vmatprep.subr.mxu0 0.0
    %1672 = vmatpush1.msra.mxu0 0.0
    %1673 = vmatprep.subr.mxu0 0.0
    %1674 = vmatpush1.msra.mxu0 0.0
    %1675 = vmatprep.subr.mxu0 0.0
    %1676 = vmatpush1.msra.mxu0 0.0
    %1677 = vmatprep.subr.mxu0 0.0
    %1678 = vmatpush1.msra.mxu0 0.0
    %1679 = vmatprep.subr.mxu0 0.0
    %1680 = vmatpush1.msra.mxu0 0.0
    %1681 = vmatprep.subr.mxu0 0.0
    %1682 = vmatpush1.msra.mxu0 0.0
    %1683 = vmatprep.subr.mxu0 0.0
    %1684 = vmatpush1.msra.mxu0 0.0
    %1685 = vmatprep.subr.mxu0 0.0
    %1686 = vmatpush1.msra.mxu0 0.0
    %1687 = vmatprep.subr.mxu0 0.0
    %1688 = vmatpush1.msra.mxu0 0.0
    %1689 = vmatprep.subr.mxu0 0.0
    %1690 = vmatpush1.msra.mxu0 0.0
    %1691 = vmatprep.subr.mxu0 0.0
    %1692 = vmatpush1.msra.mxu0 0.0
    %1693 = vmatprep.subr.mxu0 0.0
    %1694 = vmatpush1.msra.mxu0 0.0
    %1695 = vmatprep.subr.mxu0 0.0
    %1696 = vmatpush1.msra.mxu0 0.0
    %1697 = vmatprep.subr.mxu0 0.0
    %1698 = vmatpush1.msra.mxu0 %v1662
    %1699 = vmatprep.subr.mxu0 0.0
    %1700 = vmatpush1.msra.mxu0 %v1660
    %1701 = vmatprep.subr.mxu0 0.0
    %1702 = vmatpush2.msra.mxu0 0.0
    %1703 = vmatprep.subr.mxu0 0.0
    %1704 = vmatpush2.msra.mxu0 0.0
    %1705 = vmatprep.subr.mxu0 0.0
    %1706 = vmatpush2.msra.mxu0 0.0
    %1707 = vmatprep.subr.mxu0 0.0
    %1708 = vmatpush2.msra.mxu0 0.0
    %1709 = vmatprep.subr.mxu0 0.0
    %1710 = vmatpush2.msra.mxu0 0.0
    %1711 = vmatprep.subr.mxu0 0.0
    %1712 = vmatpush2.msra.mxu0 0.0
    %1713 = vmatprep.subr.mxu0 0.0
    %1714 = vmatpush2.msra.mxu0 0.0
    %1715 = vmatprep.subr.mxu0 0.0
    %1716 = vmatpush2.msra.mxu0 0.0
    %1717 = vmatprep.subr.mxu0 0.0
    %1718 = vmatpush2.msra.mxu0 0.0
    %1719 = vmatprep.subr.mxu0 0.0
    %1720 = vmatpush2.msra.mxu0 0.0
    %1721 = vmatprep.subr.mxu0 0.0
    %1722 = vmatpush2.msra.mxu0 0.0
    %1723 = vmatprep.subr.mxu0 0.0
    %1724 = vmatpush2.msra.mxu0 0.0
    %1725 = vmatprep.subr.mxu0 0.0
    %1726 = vmatpush2.msra.mxu0 0.0
    %1727 = vmatprep.subr.mxu0 0.0
    %1728 = vmatpush2.msra.mxu0 0.0
    %1729 = vmatprep.subr.mxu0 0.0
    %1730 = vmatpush2.msra.mxu0 0.0
    %1731 = vmatprep.subr.mxu0 0.0
    %1732 = vmatpush2.msra.mxu0 0.0
    %1733 = vmatprep.mubr.f32.mxu0 0.0
    %1734 = vmatmul.mubr.f32.gmra.mxu0 %v1665
    %v1735 = vpop.f32.mrf.mxu0
    %v1736 = vadd.f32 0.0, %v1735
    %v1737 = vpop.f32.mrf.mxu0
    %1738 = vmatprep.mubr.f32.mxu0 0.0
    %1739 = vmatmul.mubr.f32.gmra.mxu0 %v1667
    %v1740 = vpop.f32.mrf.mxu0
    %v1741 = vadd.f32 0.0, %v1740
    %v1742 = vpop.f32.mrf.mxu0
    %1743 = vdwg.mxu0
    %v1748 = vcombine.low %v1625, %v1626
    %v1749 = vcombine.low %v1627, %v1628
    %1750 = vrot.lane.b32.xlu0 %v200, 96
    %v1751 = vpop.permute.xlu0 %1750
    %1752 = vrot.lane.b32.xlu0 %v205, 96
    %v1753 = vpop.permute.xlu0 %1752
    %v1756 = vsel %vm74, %v1748, 0
    %v1758 = vsel %vm74, %v1749, 0
    %1760 = vmatprep.subr.mxu0 0.0
    %1761 = vmatpush1.msra.mxu0 0.0
    %1762 = vmatprep.subr.mxu0 0.0
    %1763 = vmatpush1.msra.mxu0 0.0
    %1764 = vmatprep.subr.mxu0 0.0
    %1765 = vmatpush1.msra.mxu0 0.0
    %1766 = vmatprep.subr.mxu0 0.0
    %1767 = vmatpush1.msra.mxu0 0.0
    %1768 = vmatprep.subr.mxu0 0.0
    %1769 = vmatpush1.msra.mxu0 0.0
    %1770 = vmatprep.subr.mxu0 0.0
    %1771 = vmatpush1.msra.mxu0 0.0
    %1772 = vmatprep.subr.mxu0 0.0
    %1773 = vmatpush1.msra.mxu0 0.0
    %1774 = vmatprep.subr.mxu0 0.0
    %1775 = vmatpush1.msra.mxu0 0.0
    %1776 = vmatprep.subr.mxu0 0.0
    %1777 = vmatpush1.msra.mxu0 0.0
    %1778 = vmatprep.subr.mxu0 0.0
    %1779 = vmatpush1.msra.mxu0 0.0
    %1780 = vmatprep.subr.mxu0 0.0
    %1781 = vmatpush1.msra.mxu0 0.0
    %1782 = vmatprep.subr.mxu0 0.0
    %1783 = vmatpush1.msra.mxu0 0.0
    %1784 = vmatprep.subr.mxu0 0.0
    %1785 = vmatpush1.msra.mxu0 0.0
    %1786 = vmatprep.subr.mxu0 0.0
    %1787 = vmatpush1.msra.mxu0 0.0
    %1788 = vmatprep.subr.mxu0 0.0
    %1789 = vmatpush1.msra.mxu0 %v1753
    %1790 = vmatprep.subr.mxu0 0.0
    %1791 = vmatpush1.msra.mxu0 %v1751
    %1792 = vmatprep.subr.mxu0 0.0
    %1793 = vmatpush2.msra.mxu0 0.0
    %1794 = vmatprep.subr.mxu0 0.0
    %1795 = vmatpush2.msra.mxu0 0.0
    %1796 = vmatprep.subr.mxu0 0.0
    %1797 = vmatpush2.msra.mxu0 0.0
    %1798 = vmatprep.subr.mxu0 0.0
    %1799 = vmatpush2.msra.mxu0 0.0
    %1800 = vmatprep.subr.mxu0 0.0
    %1801 = vmatpush2.msra.mxu0 0.0
    %1802 = vmatprep.subr.mxu0 0.0
    %1803 = vmatpush2.msra.mxu0 0.0
    %1804 = vmatprep.subr.mxu0 0.0
    %1805 = vmatpush2.msra.mxu0 0.0
    %1806 = vmatprep.subr.mxu0 0.0
    %1807 = vmatpush2.msra.mxu0 0.0
    %1808 = vmatprep.subr.mxu0 0.0
    %1809 = vmatpush2.msra.mxu0 0.0
    %1810 = vmatprep.subr.mxu0 0.0
    %1811 = vmatpush2.msra.mxu0 0.0
    %1812 = vmatprep.subr.mxu0 0.0
    %1813 = vmatpush2.msra.mxu0 0.0
    %1814 = vmatprep.subr.mxu0 0.0
    %1815 = vmatpush2.msra.mxu0 0.0
    %1816 = vmatprep.subr.mxu0 0.0
    %1817 = vmatpush2.msra.mxu0 0.0
    %1818 = vmatprep.subr.mxu0 0.0
    %1819 = vmatpush2.msra.mxu0 0.0
    %1820 = vmatprep.subr.mxu0 0.0
    %1821 = vmatpush2.msra.mxu0 0.0
    %1822 = vmatprep.subr.mxu0 0.0
    %1823 = vmatpush2.msra.mxu0 0.0
    %1824 = vmatprep.mubr.f32.mxu0 0.0
    %1825 = vmatmul.mubr.f32.gmra.mxu0 %v1756
    %v1826 = vpop.f32.mrf.mxu0
    %v1827 = vadd.f32 0.0, %v1826
    %v1828 = vpop.f32.mrf.mxu0
    %1829 = vmatprep.mubr.f32.mxu0 0.0
    %1830 = vmatmul.mubr.f32.gmra.mxu0 %v1758
    %v1831 = vpop.f32.mrf.mxu0
    %v1832 = vadd.f32 0.0, %v1831
    %v1833 = vpop.f32.mrf.mxu0
    %1834 = vdwg.mxu0
    %v1839 = vcombine.low %v1629, %v1630
    %v1840 = vcombine.low %v1631, %v1632
    %1841 = vrot.lane.b32.xlu0 %v210, 96
    %v1842 = vpop.permute.xlu0 %1841
    %1843 = vrot.lane.b32.xlu0 %v215, 96
    %v1844 = vpop.permute.xlu0 %1843
    %v1847 = vsel %vm74, %v1839, 0
    %v1849 = vsel %vm74, %v1840, 0
    %1851 = vmatprep.subr.mxu0 0.0
    %1852 = vmatpush1.msra.mxu0 0.0
    %1853 = vmatprep.subr.mxu0 0.0
    %1854 = vmatpush1.msra.mxu0 0.0
    %1855 = vmatprep.subr.mxu0 0.0
    %1856 = vmatpush1.msra.mxu0 0.0
    %1857 = vmatprep.subr.mxu0 0.0
    %1858 = vmatpush1.msra.mxu0 0.0
    %1859 = vmatprep.subr.mxu0 0.0
    %1860 = vmatpush1.msra.mxu0 0.0
    %1861 = vmatprep.subr.mxu0 0.0
    %1862 = vmatpush1.msra.mxu0 0.0
    %1863 = vmatprep.subr.mxu0 0.0
    %1864 = vmatpush1.msra.mxu0 0.0
    %1865 = vmatprep.subr.mxu0 0.0
    %1866 = vmatpush1.msra.mxu0 0.0
    %1867 = vmatprep.subr.mxu0 0.0
    %1868 = vmatpush1.msra.mxu0 0.0
    %1869 = vmatprep.subr.mxu0 0.0
    %1870 = vmatpush1.msra.mxu0 0.0
    %1871 = vmatprep.subr.mxu0 0.0
    %1872 = vmatpush1.msra.mxu0 0.0
    %1873 = vmatprep.subr.mxu0 0.0
    %1874 = vmatpush1.msra.mxu0 0.0
    %1875 = vmatprep.subr.mxu0 0.0
    %1876 = vmatpush1.msra.mxu0 0.0
    %1877 = vmatprep.subr.mxu0 0.0
    %1878 = vmatpush1.msra.mxu0 0.0
    %1879 = vmatprep.subr.mxu0 0.0
    %1880 = vmatpush1.msra.mxu0 %v1844
    %1881 = vmatprep.subr.mxu0 0.0
    %1882 = vmatpush1.msra.mxu0 %v1842
    %1883 = vmatprep.subr.mxu0 0.0
    %1884 = vmatpush2.msra.mxu0 0.0
    %1885 = vmatprep.subr.mxu0 0.0
    %1886 = vmatpush2.msra.mxu0 0.0
    %1887 = vmatprep.subr.mxu0 0.0
    %1888 = vmatpush2.msra.mxu0 0.0
    %1889 = vmatprep.subr.mxu0 0.0
    %1890 = vmatpush2.msra.mxu0 0.0
    %1891 = vmatprep.subr.mxu0 0.0
    %1892 = vmatpush2.msra.mxu0 0.0
    %1893 = vmatprep.subr.mxu0 0.0
    %1894 = vmatpush2.msra.mxu0 0.0
    %1895 = vmatprep.subr.mxu0 0.0
    %1896 = vmatpush2.msra.mxu0 0.0
    %1897 = vmatprep.subr.mxu0 0.0
    %1898 = vmatpush2.msra.mxu0 0.0
    %1899 = vmatprep.subr.mxu0 0.0
    %1900 = vmatpush2.msra.mxu0 0.0
    %1901 = vmatprep.subr.mxu0 0.0
    %1902 = vmatpush2.msra.mxu0 0.0
    %1903 = vmatprep.subr.mxu0 0.0
    %1904 = vmatpush2.msra.mxu0 0.0
    %1905 = vmatprep.subr.mxu0 0.0
    %1906 = vmatpush2.msra.mxu0 0.0
    %1907 = vmatprep.subr.mxu0 0.0
    %1908 = vmatpush2.msra.mxu0 0.0
    %1909 = vmatprep.subr.mxu0 0.0
    %1910 = vmatpush2.msra.mxu0 0.0
    %1911 = vmatprep.subr.mxu0 0.0
    %1912 = vmatpush2.msra.mxu0 0.0
    %1913 = vmatprep.subr.mxu0 0.0
    %1914 = vmatpush2.msra.mxu0 0.0
    %1915 = vmatprep.mubr.f32.mxu0 0.0
    %1916 = vmatmul.mubr.f32.gmra.mxu0 %v1847
    %v1917 = vpop.f32.mrf.mxu0
    %v1918 = vadd.f32 0.0, %v1917
    %v1919 = vpop.f32.mrf.mxu0
    %1920 = vmatprep.mubr.f32.mxu0 0.0
    %1921 = vmatmul.mubr.f32.gmra.mxu0 %v1849
    %v1922 = vpop.f32.mrf.mxu0
    %v1923 = vadd.f32 0.0, %v1922
    %v1924 = vpop.f32.mrf.mxu0
    %1925 = vdwg.mxu0
    %v1930 = vcombine.low %v1633, %v1634
    %v1931 = vcombine.low %v1635, %v1636
    %1932 = vrot.lane.b32.xlu0 %v220, 96
    %v1933 = vpop.permute.xlu0 %1932
    %1934 = vrot.lane.b32.xlu0 %v225, 96
    %v1935 = vpop.permute.xlu0 %1934
    %v1938 = vsel %vm74, %v1930, 0
    %v1940 = vsel %vm74, %v1931, 0
    %1942 = vmatprep.subr.mxu0 0.0
    %1943 = vmatpush1.msra.mxu0 0.0
    %1944 = vmatprep.subr.mxu0 0.0
    %1945 = vmatpush1.msra.mxu0 0.0
    %1946 = vmatprep.subr.mxu0 0.0
    %1947 = vmatpush1.msra.mxu0 0.0
    %1948 = vmatprep.subr.mxu0 0.0
    %1949 = vmatpush1.msra.mxu0 0.0
    %1950 = vmatprep.subr.mxu0 0.0
    %1951 = vmatpush1.msra.mxu0 0.0
    %1952 = vmatprep.subr.mxu0 0.0
    %1953 = vmatpush1.msra.mxu0 0.0
    %1954 = vmatprep.subr.mxu0 0.0
    %1955 = vmatpush1.msra.mxu0 0.0
    %1956 = vmatprep.subr.mxu0 0.0
    %1957 = vmatpush1.msra.mxu0 0.0
    %1958 = vmatprep.subr.mxu0 0.0
    %1959 = vmatpush1.msra.mxu0 0.0
    %1960 = vmatprep.subr.mxu0 0.0
    %1961 = vmatpush1.msra.mxu0 0.0
    %1962 = vmatprep.subr.mxu0 0.0
    %1963 = vmatpush1.msra.mxu0 0.0
    %1964 = vmatprep.subr.mxu0 0.0
    %1965 = vmatpush1.msra.mxu0 0.0
    %1966 = vmatprep.subr.mxu0 0.0
    %1967 = vmatpush1.msra.mxu0 0.0
    %1968 = vmatprep.subr.mxu0 0.0
    %1969 = vmatpush1.msra.mxu0 0.0
    %1970 = vmatprep.subr.mxu0 0.0
    %1971 = vmatpush1.msra.mxu0 %v1935
    %1972 = vmatprep.subr.mxu0 0.0
    %1973 = vmatpush1.msra.mxu0 %v1933
    %1974 = vmatprep.subr.mxu0 0.0
    %1975 = vmatpush2.msra.mxu0 0.0
    %1976 = vmatprep.subr.mxu0 0.0
    %1977 = vmatpush2.msra.mxu0 0.0
    %1978 = vmatprep.subr.mxu0 0.0
    %1979 = vmatpush2.msra.mxu0 0.0
    %1980 = vmatprep.subr.mxu0 0.0
    %1981 = vmatpush2.msra.mxu0 0.0
    %1982 = vmatprep.subr.mxu0 0.0
    %1983 = vmatpush2.msra.mxu0 0.0
    %1984 = vmatprep.subr.mxu0 0.0
    %1985 = vmatpush2.msra.mxu0 0.0
    %1986 = vmatprep.subr.mxu0 0.0
    %1987 = vmatpush2.msra.mxu0 0.0
    %1988 = vmatprep.subr.mxu0 0.0
    %1989 = vmatpush2.msra.mxu0 0.0
    %1990 = vmatprep.subr.mxu0 0.0
    %1991 = vmatpush2.msra.mxu0 0.0
    %1992 = vmatprep.subr.mxu0 0.0
    %1993 = vmatpush2.msra.mxu0 0.0
    %1994 = vmatprep.subr.mxu0 0.0
    %1995 = vmatpush2.msra.mxu0 0.0
    %1996 = vmatprep.subr.mxu0 0.0
    %1997 = vmatpush2.msra.mxu0 0.0
    %1998 = vmatprep.subr.mxu0 0.0
    %1999 = vmatpush2.msra.mxu0 0.0
    %2000 = vmatprep.subr.mxu0 0.0
    %2001 = vmatpush2.msra.mxu0 0.0
    %2002 = vmatprep.subr.mxu0 0.0
    %2003 = vmatpush2.msra.mxu0 0.0
    %2004 = vmatprep.subr.mxu0 0.0
    %2005 = vmatpush2.msra.mxu0 0.0
    %2006 = vmatprep.mubr.f32.mxu0 0.0
    %2007 = vmatmul.mubr.f32.gmra.mxu0 %v1938
    %v2008 = vpop.f32.mrf.mxu0
    %v2009 = vadd.f32 0.0, %v2008
    %v2010 = vpop.f32.mrf.mxu0
    %2011 = vmatprep.mubr.f32.mxu0 0.0
    %2012 = vmatmul.mubr.f32.gmra.mxu0 %v1940
    %v2013 = vpop.f32.mrf.mxu0
    %v2014 = vadd.f32 0.0, %v2013
    %v2015 = vpop.f32.mrf.mxu0
    %2016 = vdwg.mxu0
    %v2021 = vcombine.low %v1637, %v1638
    %v2022 = vcombine.low %v1639, %v1640
    %2023 = vrot.lane.b32.xlu0 %v230, 96
    %v2024 = vpop.permute.xlu0 %2023
    %2025 = vrot.lane.b32.xlu0 %v235, 96
    %v2026 = vpop.permute.xlu0 %2025
    %v2029 = vsel %vm74, %v2021, 0
    %v2031 = vsel %vm74, %v2022, 0
    %2033 = vmatprep.subr.mxu0 0.0
    %2034 = vmatpush1.msra.mxu0 0.0
    %2035 = vmatprep.subr.mxu0 0.0
    %2036 = vmatpush1.msra.mxu0 0.0
    %2037 = vmatprep.subr.mxu0 0.0
    %2038 = vmatpush1.msra.mxu0 0.0
    %2039 = vmatprep.subr.mxu0 0.0
    %2040 = vmatpush1.msra.mxu0 0.0
    %2041 = vmatprep.subr.mxu0 0.0
    %2042 = vmatpush1.msra.mxu0 0.0
    %2043 = vmatprep.subr.mxu0 0.0
    %2044 = vmatpush1.msra.mxu0 0.0
    %2045 = vmatprep.subr.mxu0 0.0
    %2046 = vmatpush1.msra.mxu0 0.0
    %2047 = vmatprep.subr.mxu0 0.0
    %2048 = vmatpush1.msra.mxu0 0.0
    %2049 = vmatprep.subr.mxu0 0.0
    %2050 = vmatpush1.msra.mxu0 0.0
    %2051 = vmatprep.subr.mxu0 0.0
    %2052 = vmatpush1.msra.mxu0 0.0
    %2053 = vmatprep.subr.mxu0 0.0
    %2054 = vmatpush1.msra.mxu0 0.0
    %2055 = vmatprep.subr.mxu0 0.0
    %2056 = vmatpush1.msra.mxu0 0.0
    %2057 = vmatprep.subr.mxu0 0.0
    %2058 = vmatpush1.msra.mxu0 0.0
    %2059 = vmatprep.subr.mxu0 0.0
    %2060 = vmatpush1.msra.mxu0 0.0
    %2061 = vmatprep.subr.mxu0 0.0
    %2062 = vmatpush1.msra.mxu0 %v2026
    %2063 = vmatprep.subr.mxu0 0.0
    %2064 = vmatpush1.msra.mxu0 %v2024
    %2065 = vmatprep.subr.mxu0 0.0
    %2066 = vmatpush2.msra.mxu0 0.0
    %2067 = vmatprep.subr.mxu0 0.0
    %2068 = vmatpush2.msra.mxu0 0.0
    %2069 = vmatprep.subr.mxu0 0.0
    %2070 = vmatpush2.msra.mxu0 0.0
    %2071 = vmatprep.subr.mxu0 0.0
    %2072 = vmatpush2.msra.mxu0 0.0
    %2073 = vmatprep.subr.mxu0 0.0
    %2074 = vmatpush2.msra.mxu0 0.0
    %2075 = vmatprep.subr.mxu0 0.0
    %2076 = vmatpush2.msra.mxu0 0.0
    %2077 = vmatprep.subr.mxu0 0.0
    %2078 = vmatpush2.msra.mxu0 0.0
    %2079 = vmatprep.subr.mxu0 0.0
    %2080 = vmatpush2.msra.mxu0 0.0
    %2081 = vmatprep.subr.mxu0 0.0
    %2082 = vmatpush2.msra.mxu0 0.0
    %2083 = vmatprep.subr.mxu0 0.0
    %2084 = vmatpush2.msra.mxu0 0.0
    %2085 = vmatprep.subr.mxu0 0.0
    %2086 = vmatpush2.msra.mxu0 0.0
    %2087 = vmatprep.subr.mxu0 0.0
    %2088 = vmatpush2.msra.mxu0 0.0
    %2089 = vmatprep.subr.mxu0 0.0
    %2090 = vmatpush2.msra.mxu0 0.0
    %2091 = vmatprep.subr.mxu0 0.0
    %2092 = vmatpush2.msra.mxu0 0.0
    %2093 = vmatprep.subr.mxu0 0.0
    %2094 = vmatpush2.msra.mxu0 0.0
    %2095 = vmatprep.subr.mxu0 0.0
    %2096 = vmatpush2.msra.mxu0 0.0
    %2097 = vmatprep.mubr.f32.mxu0 0.0
    %2098 = vmatmul.mubr.f32.gmra.mxu0 %v2029
    %v2099 = vpop.f32.mrf.mxu0
    %v2100 = vadd.f32 0.0, %v2099
    %v2101 = vpop.f32.mrf.mxu0
    %2102 = vmatprep.mubr.f32.mxu0 0.0
    %2103 = vmatmul.mubr.f32.gmra.mxu0 %v2031
    %v2104 = vpop.f32.mrf.mxu0
    %v2105 = vadd.f32 0.0, %v2104
    %v2106 = vpop.f32.mrf.mxu0
    %2107 = vdwg.mxu0
    %v2112 = vcombine.low %v1641, %v1642
    %v2113 = vcombine.low %v1643, %v1644
    %2114 = vrot.lane.b32.xlu0 %v240, 96
    %v2115 = vpop.permute.xlu0 %2114
    %2116 = vrot.lane.b32.xlu0 %v245, 96
    %v2117 = vpop.permute.xlu0 %2116
    %v2120 = vsel %vm74, %v2112, 0
    %v2122 = vsel %vm74, %v2113, 0
    %2124 = vmatprep.subr.mxu0 0.0
    %2125 = vmatpush1.msra.mxu0 0.0
    %2126 = vmatprep.subr.mxu0 0.0
    %2127 = vmatpush1.msra.mxu0 0.0
    %2128 = vmatprep.subr.mxu0 0.0
    %2129 = vmatpush1.msra.mxu0 0.0
    %2130 = vmatprep.subr.mxu0 0.0
    %2131 = vmatpush1.msra.mxu0 0.0
    %2132 = vmatprep.subr.mxu0 0.0
    %2133 = vmatpush1.msra.mxu0 0.0
    %2134 = vmatprep.subr.mxu0 0.0
    %2135 = vmatpush1.msra.mxu0 0.0
    %2136 = vmatprep.subr.mxu0 0.0
    %2137 = vmatpush1.msra.mxu0 0.0
    %2138 = vmatprep.subr.mxu0 0.0
    %2139 = vmatpush1.msra.mxu0 0.0
    %2140 = vmatprep.subr.mxu0 0.0
    %2141 = vmatpush1.msra.mxu0 0.0
    %2142 = vmatprep.subr.mxu0 0.0
    %2143 = vmatpush1.msra.mxu0 0.0
    %2144 = vmatprep.subr.mxu0 0.0
    %2145 = vmatpush1.msra.mxu0 0.0
    %2146 = vmatprep.subr.mxu0 0.0
    %2147 = vmatpush1.msra.mxu0 0.0
    %2148 = vmatprep.subr.mxu0 0.0
    %2149 = vmatpush1.msra.mxu0 0.0
    %2150 = vmatprep.subr.mxu0 0.0
    %2151 = vmatpush1.msra.mxu0 0.0
    %2152 = vmatprep.subr.mxu0 0.0
    %2153 = vmatpush1.msra.mxu0 %v2117
    %2154 = vmatprep.subr.mxu0 0.0
    %2155 = vmatpush1.msra.mxu0 %v2115
    %2156 = vmatprep.subr.mxu0 0.0
    %2157 = vmatpush2.msra.mxu0 0.0
    %2158 = vmatprep.subr.mxu0 0.0
    %2159 = vmatpush2.msra.mxu0 0.0
    %2160 = vmatprep.subr.mxu0 0.0
    %2161 = vmatpush2.msra.mxu0 0.0
    %2162 = vmatprep.subr.mxu0 0.0
    %2163 = vmatpush2.msra.mxu0 0.0
    %2164 = vmatprep.subr.mxu0 0.0
    %2165 = vmatpush2.msra.mxu0 0.0
    %2166 = vmatprep.subr.mxu0 0.0
    %2167 = vmatpush2.msra.mxu0 0.0
    %2168 = vmatprep.subr.mxu0 0.0
    %2169 = vmatpush2.msra.mxu0 0.0
    %2170 = vmatprep.subr.mxu0 0.0
    %2171 = vmatpush2.msra.mxu0 0.0
    %2172 = vmatprep.subr.mxu0 0.0
    %2173 = vmatpush2.msra.mxu0 0.0
    %2174 = vmatprep.subr.mxu0 0.0
    %2175 = vmatpush2.msra.mxu0 0.0
    %2176 = vmatprep.subr.mxu0 0.0
    %2177 = vmatpush2.msra.mxu0 0.0
    %2178 = vmatprep.subr.mxu0 0.0
    %2179 = vmatpush2.msra.mxu0 0.0
    %2180 = vmatprep.subr.mxu0 0.0
    %2181 = vmatpush2.msra.mxu0 0.0
    %2182 = vmatprep.subr.mxu0 0.0
    %2183 = vmatpush2.msra.mxu0 0.0
    %2184 = vmatprep.subr.mxu0 0.0
    %2185 = vmatpush2.msra.mxu0 0.0
    %2186 = vmatprep.subr.mxu0 0.0
    %2187 = vmatpush2.msra.mxu0 0.0
    %2188 = vmatprep.mubr.f32.mxu0 0.0
    %2189 = vmatmul.mubr.f32.gmra.mxu0 %v2120
    %v2190 = vpop.f32.mrf.mxu0
    %v2191 = vadd.f32 0.0, %v2190
    %v2192 = vpop.f32.mrf.mxu0
    %2193 = vmatprep.mubr.f32.mxu0 0.0
    %2194 = vmatmul.mubr.f32.gmra.mxu0 %v2122
    %v2195 = vpop.f32.mrf.mxu0
    %v2196 = vadd.f32 0.0, %v2195
    %v2197 = vpop.f32.mrf.mxu0
    %2198 = vdwg.mxu0
    %v2203 = vcombine.low %v1645, %v1646
    %v2204 = vcombine.low %v1647, %v1648
    %2205 = vrot.lane.b32.xlu0 %v250, 96
    %v2206 = vpop.permute.xlu0 %2205
    %2207 = vrot.lane.b32.xlu0 %v255, 96
    %v2208 = vpop.permute.xlu0 %2207
    %v2211 = vsel %vm74, %v2203, 0
    %v2213 = vsel %vm74, %v2204, 0
    %2215 = vmatprep.subr.mxu0 0.0
    %2216 = vmatpush1.msra.mxu0 0.0
    %2217 = vmatprep.subr.mxu0 0.0
    %2218 = vmatpush1.msra.mxu0 0.0
    %2219 = vmatprep.subr.mxu0 0.0
    %2220 = vmatpush1.msra.mxu0 0.0
    %2221 = vmatprep.subr.mxu0 0.0
    %2222 = vmatpush1.msra.mxu0 0.0
    %2223 = vmatprep.subr.mxu0 0.0
    %2224 = vmatpush1.msra.mxu0 0.0
    %2225 = vmatprep.subr.mxu0 0.0
    %2226 = vmatpush1.msra.mxu0 0.0
    %2227 = vmatprep.subr.mxu0 0.0
    %2228 = vmatpush1.msra.mxu0 0.0
    %2229 = vmatprep.subr.mxu0 0.0
    %2230 = vmatpush1.msra.mxu0 0.0
    %2231 = vmatprep.subr.mxu0 0.0
    %2232 = vmatpush1.msra.mxu0 0.0
    %2233 = vmatprep.subr.mxu0 0.0
    %2234 = vmatpush1.msra.mxu0 0.0
    %2235 = vmatprep.subr.mxu0 0.0
    %2236 = vmatpush1.msra.mxu0 0.0
    %2237 = vmatprep.subr.mxu0 0.0
    %2238 = vmatpush1.msra.mxu0 0.0
    %2239 = vmatprep.subr.mxu0 0.0
    %2240 = vmatpush1.msra.mxu0 0.0
    %2241 = vmatprep.subr.mxu0 0.0
    %2242 = vmatpush1.msra.mxu0 0.0
    %2243 = vmatprep.subr.mxu0 0.0
    %2244 = vmatpush1.msra.mxu0 %v2208
    %2245 = vmatprep.subr.mxu0 0.0
    %2246 = vmatpush1.msra.mxu0 %v2206
    %2247 = vmatprep.subr.mxu0 0.0
    %2248 = vmatpush2.msra.mxu0 0.0
    %2249 = vmatprep.subr.mxu0 0.0
    %2250 = vmatpush2.msra.mxu0 0.0
    %2251 = vmatprep.subr.mxu0 0.0
    %2252 = vmatpush2.msra.mxu0 0.0
    %2253 = vmatprep.subr.mxu0 0.0
    %2254 = vmatpush2.msra.mxu0 0.0
    %2255 = vmatprep.subr.mxu0 0.0
    %2256 = vmatpush2.msra.mxu0 0.0
    %2257 = vmatprep.subr.mxu0 0.0
    %2258 = vmatpush2.msra.mxu0 0.0
    %2259 = vmatprep.subr.mxu0 0.0
    %2260 = vmatpush2.msra.mxu0 0.0
    %2261 = vmatprep.subr.mxu0 0.0
    %2262 = vmatpush2.msra.mxu0 0.0
    %2263 = vmatprep.subr.mxu0 0.0
    %2264 = vmatpush2.msra.mxu0 0.0
    %2265 = vmatprep.subr.mxu0 0.0
    %2266 = vmatpush2.msra.mxu0 0.0
    %2267 = vmatprep.subr.mxu0 0.0
    %2268 = vmatpush2.msra.mxu0 0.0
    %2269 = vmatprep.subr.mxu0 0.0
    %2270 = vmatpush2.msra.mxu0 0.0
    %2271 = vmatprep.subr.mxu0 0.0
    %2272 = vmatpush2.msra.mxu0 0.0
    %2273 = vmatprep.subr.mxu0 0.0
    %2274 = vmatpush2.msra.mxu0 0.0
    %2275 = vmatprep.subr.mxu0 0.0
    %2276 = vmatpush2.msra.mxu0 0.0
    %2277 = vmatprep.subr.mxu0 0.0
    %2278 = vmatpush2.msra.mxu0 0.0
    %2279 = vmatprep.mubr.f32.mxu0 0.0
    %2280 = vmatmul.mubr.f32.gmra.mxu0 %v2211
    %v2281 = vpop.f32.mrf.mxu0
    %v2282 = vadd.f32 0.0, %v2281
    %v2283 = vpop.f32.mrf.mxu0
    %2284 = vmatprep.mubr.f32.mxu0 0.0
    %2285 = vmatmul.mubr.f32.gmra.mxu0 %v2213
    %v2286 = vpop.f32.mrf.mxu0
    %v2287 = vadd.f32 0.0, %v2286
    %v2288 = vpop.f32.mrf.mxu0
    %2289 = vdwg.mxu0
    %v2294 = vcombine.low %v1649, %v1650
    %v2295 = vcombine.low %v1651, %v1652
    %2296 = vrot.lane.b32.xlu0 %v260, 96
    %v2297 = vpop.permute.xlu0 %2296
    %2298 = vrot.lane.b32.xlu0 %v265, 96
    %v2299 = vpop.permute.xlu0 %2298
    %v2302 = vsel %vm74, %v2294, 0
    %v2304 = vsel %vm74, %v2295, 0
    %2306 = vmatprep.subr.mxu0 0.0
    %2307 = vmatpush1.msra.mxu0 0.0
    %2308 = vmatprep.subr.mxu0 0.0
    %2309 = vmatpush1.msra.mxu0 0.0
    %2310 = vmatprep.subr.mxu0 0.0
    %2311 = vmatpush1.msra.mxu0 0.0
    %2312 = vmatprep.subr.mxu0 0.0
    %2313 = vmatpush1.msra.mxu0 0.0
    %2314 = vmatprep.subr.mxu0 0.0
    %2315 = vmatpush1.msra.mxu0 0.0
    %2316 = vmatprep.subr.mxu0 0.0
    %2317 = vmatpush1.msra.mxu0 0.0
    %2318 = vmatprep.subr.mxu0 0.0
    %2319 = vmatpush1.msra.mxu0 0.0
    %2320 = vmatprep.subr.mxu0 0.0
    %2321 = vmatpush1.msra.mxu0 0.0
    %2322 = vmatprep.subr.mxu0 0.0
    %2323 = vmatpush1.msra.mxu0 0.0
    %2324 = vmatprep.subr.mxu0 0.0
    %2325 = vmatpush1.msra.mxu0 0.0
    %2326 = vmatprep.subr.mxu0 0.0
    %2327 = vmatpush1.msra.mxu0 0.0
    %2328 = vmatprep.subr.mxu0 0.0
    %2329 = vmatpush1.msra.mxu0 0.0
    %2330 = vmatprep.subr.mxu0 0.0
    %2331 = vmatpush1.msra.mxu0 0.0
    %2332 = vmatprep.subr.mxu0 0.0
    %2333 = vmatpush1.msra.mxu0 0.0
    %2334 = vmatprep.subr.mxu0 0.0
    %2335 = vmatpush1.msra.mxu0 %v2299
    %2336 = vmatprep.subr.mxu0 0.0
    %2337 = vmatpush1.msra.mxu0 %v2297
    %2338 = vmatprep.subr.mxu0 0.0
    %2339 = vmatpush2.msra.mxu0 0.0
    %2340 = vmatprep.subr.mxu0 0.0
    %2341 = vmatpush2.msra.mxu0 0.0
    %2342 = vmatprep.subr.mxu0 0.0
    %2343 = vmatpush2.msra.mxu0 0.0
    %2344 = vmatprep.subr.mxu0 0.0
    %2345 = vmatpush2.msra.mxu0 0.0
    %2346 = vmatprep.subr.mxu0 0.0
    %2347 = vmatpush2.msra.mxu0 0.0
    %2348 = vmatprep.subr.mxu0 0.0
    %2349 = vmatpush2.msra.mxu0 0.0
    %2350 = vmatprep.subr.mxu0 0.0
    %2351 = vmatpush2.msra.mxu0 0.0
    %2352 = vmatprep.subr.mxu0 0.0
    %2353 = vmatpush2.msra.mxu0 0.0
    %2354 = vmatprep.subr.mxu0 0.0
    %2355 = vmatpush2.msra.mxu0 0.0
    %2356 = vmatprep.subr.mxu0 0.0
    %2357 = vmatpush2.msra.mxu0 0.0
    %2358 = vmatprep.subr.mxu0 0.0
    %2359 = vmatpush2.msra.mxu0 0.0
    %2360 = vmatprep.subr.mxu0 0.0
    %2361 = vmatpush2.msra.mxu0 0.0
    %2362 = vmatprep.subr.mxu0 0.0
    %2363 = vmatpush2.msra.mxu0 0.0
    %2364 = vmatprep.subr.mxu0 0.0
    %2365 = vmatpush2.msra.mxu0 0.0
    %2366 = vmatprep.subr.mxu0 0.0
    %2367 = vmatpush2.msra.mxu0 0.0
    %2368 = vmatprep.subr.mxu0 0.0
    %2369 = vmatpush2.msra.mxu0 0.0
    %2370 = vmatprep.mubr.f32.mxu0 0.0
    %2371 = vmatmul.mubr.f32.gmra.mxu0 %v2302
    %v2372 = vpop.f32.mrf.mxu0
    %v2373 = vadd.f32 0.0, %v2372
    %v2374 = vpop.f32.mrf.mxu0
    %2375 = vmatprep.mubr.f32.mxu0 0.0
    %2376 = vmatmul.mubr.f32.gmra.mxu0 %v2304
    %v2377 = vpop.f32.mrf.mxu0
    %v2378 = vadd.f32 0.0, %v2377
    %v2379 = vpop.f32.mrf.mxu0
    %2380 = vdwg.mxu0
    %v2381 = vcombine.low %v1736, %v1918
    %v2382 = vcombine.high %v1736, %v1918
    %v2384 = vunpack.c.l.s4 1983009808
    %v2385 = vunpack.c.0.s8 %v2384
    %v2386 = vlaneseq
    %v2387 = vshrl.u32 %v2386, 7
    %v2388 = vsub.s32 %v2385, %v2387
    %v2389 = vrot.slane %v2381, %v2388
    %v2391 = vunpack.c.l.s4 1983009808
    %v2392 = vunpack.c.0.s8 %v2391
    %v2393 = vlaneseq
    %v2394 = vshrl.u32 %v2393, 7
    %v2395 = vsub.s32 %v2392, %v2394
    %v2396 = vrot.slane %v2382, %v2395
    %v2397 = vcombine.low %v1827, %v2009
    %v2398 = vcombine.high %v1827, %v2009
    %v2400 = vunpack.c.l.s4 1983009808
    %v2401 = vunpack.c.0.s8 %v2400
    %v2402 = vlaneseq
    %v2403 = vshrl.u32 %v2402, 7
    %v2404 = vsub.s32 %v2401, %v2403
    %v2405 = vrot.slane %v2397, %v2404
    %v2407 = vunpack.c.l.s4 1983009808
    %v2408 = vunpack.c.0.s8 %v2407
    %v2409 = vlaneseq
    %v2410 = vshrl.u32 %v2409, 7
    %v2411 = vsub.s32 %v2408, %v2410
    %v2412 = vrot.slane %v2398, %v2411
    %v2413 = vcombine.low %v2100, %v2282
    %v2414 = vcombine.high %v2100, %v2282
    %v2416 = vunpack.c.l.s4 1983009808
    %v2417 = vunpack.c.0.s8 %v2416
    %v2418 = vlaneseq
    %v2419 = vshrl.u32 %v2418, 7
    %v2420 = vsub.s32 %v2417, %v2419
    %v2421 = vrot.slane %v2413, %v2420
    %v2423 = vunpack.c.l.s4 1983009808
    %v2424 = vunpack.c.0.s8 %v2423
    %v2425 = vlaneseq
    %v2426 = vshrl.u32 %v2425, 7
    %v2427 = vsub.s32 %v2424, %v2426
    %v2428 = vrot.slane %v2414, %v2427
    %v2429 = vcombine.low %v2191, %v2373
    %v2430 = vcombine.high %v2191, %v2373
    %v2432 = vunpack.c.l.s4 1983009808
    %v2433 = vunpack.c.0.s8 %v2432
    %v2434 = vlaneseq
    %v2435 = vshrl.u32 %v2434, 7
    %v2436 = vsub.s32 %v2433, %v2435
    %v2437 = vrot.slane %v2429, %v2436
    %v2439 = vunpack.c.l.s4 1983009808
    %v2440 = vunpack.c.0.s8 %v2439
    %v2441 = vlaneseq
    %v2442 = vshrl.u32 %v2441, 7
    %v2443 = vsub.s32 %v2440, %v2442
    %v2444 = vrot.slane %v2430, %v2443
    %v2445 = vcombine.low %v2389, %v2405
    %v2446 = vcombine.high %v2389, %v2405
    %v2448 = vunpack.c.l.s4 1934713408
    %v2449 = vunpack.c.0.s8 %v2448
    %v2450 = vlaneseq
    %v2451 = vshrl.u32 %v2450, 7
    %v2452 = vsub.s32 %v2449, %v2451
    %v2453 = vrot.slane %v2445, %v2452
    %v2455 = vunpack.c.l.s4 1934713408
    %v2456 = vunpack.c.0.s8 %v2455
    %v2457 = vlaneseq
    %v2458 = vshrl.u32 %v2457, 7
    %v2459 = vsub.s32 %v2456, %v2458
    %v2460 = vrot.slane %v2446, %v2459
    %v2461 = vcombine.low %v2396, %v2412
    %v2462 = vcombine.high %v2396, %v2412
    %v2464 = vunpack.c.l.s4 1934713408
    %v2465 = vunpack.c.0.s8 %v2464
    %v2466 = vlaneseq
    %v2467 = vshrl.u32 %v2466, 7
    %v2468 = vsub.s32 %v2465, %v2467
    %v2469 = vrot.slane %v2461, %v2468
    %v2471 = vunpack.c.l.s4 1934713408
    %v2472 = vunpack.c.0.s8 %v2471
    %v2473 = vlaneseq
    %v2474 = vshrl.u32 %v2473, 7
    %v2475 = vsub.s32 %v2472, %v2474
    %v2476 = vrot.slane %v2462, %v2475
    %v2477 = vcombine.low %v2421, %v2437
    %v2478 = vcombine.high %v2421, %v2437
    %v2480 = vunpack.c.l.s4 1934713408
    %v2481 = vunpack.c.0.s8 %v2480
    %v2482 = vlaneseq
    %v2483 = vshrl.u32 %v2482, 7
    %v2484 = vsub.s32 %v2481, %v2483
    %v2485 = vrot.slane %v2477, %v2484
    %v2487 = vunpack.c.l.s4 1934713408
    %v2488 = vunpack.c.0.s8 %v2487
    %v2489 = vlaneseq
    %v2490 = vshrl.u32 %v2489, 7
    %v2491 = vsub.s32 %v2488, %v2490
    %v2492 = vrot.slane %v2478, %v2491
    %v2493 = vcombine.low %v2428, %v2444
    %v2494 = vcombine.high %v2428, %v2444
    %v2496 = vunpack.c.l.s4 1934713408
    %v2497 = vunpack.c.0.s8 %v2496
    %v2498 = vlaneseq
    %v2499 = vshrl.u32 %v2498, 7
    %v2500 = vsub.s32 %v2497, %v2499
    %v2501 = vrot.slane %v2493, %v2500
    %v2503 = vunpack.c.l.s4 1934713408
    %v2504 = vunpack.c.0.s8 %v2503
    %v2505 = vlaneseq
    %v2506 = vshrl.u32 %v2505, 7
    %v2507 = vsub.s32 %v2504, %v2506
    %v2508 = vrot.slane %v2494, %v2507
    %v2509 = vcombine.low %v2453, %v2485
    %v2510 = vcombine.high %v2453, %v2485
    %v2511 = vcombine.low %v2460, %v2492
    %v2512 = vcombine.high %v2460, %v2492
    %v2513 = vcombine.low %v2469, %v2501
    %v2514 = vcombine.high %v2469, %v2501
    %v2515 = vcombine.low %v2476, %v2508
    %v2516 = vcombine.high %v2476, %v2508
    %v2517 = vcombine.low %v1741, %v1923
    %v2518 = vcombine.high %v1741, %v1923
    %v2520 = vunpack.c.l.s4 1983009808
    %v2521 = vunpack.c.0.s8 %v2520
    %v2522 = vlaneseq
    %v2523 = vshrl.u32 %v2522, 7
    %v2524 = vsub.s32 %v2521, %v2523
    %v2525 = vrot.slane %v2517, %v2524
    %v2527 = vunpack.c.l.s4 1983009808
    %v2528 = vunpack.c.0.s8 %v2527
    %v2529 = vlaneseq
    %v2530 = vshrl.u32 %v2529, 7
    %v2531 = vsub.s32 %v2528, %v2530
    %v2532 = vrot.slane %v2518, %v2531
    %v2533 = vcombine.low %v1832, %v2014
    %v2534 = vcombine.high %v1832, %v2014
    %v2536 = vunpack.c.l.s4 1983009808
    %v2537 = vunpack.c.0.s8 %v2536
    %v2538 = vlaneseq
    %v2539 = vshrl.u32 %v2538, 7
    %v2540 = vsub.s32 %v2537, %v2539
    %v2541 = vrot.slane %v2533, %v2540
    %v2543 = vunpack.c.l.s4 1983009808
    %v2544 = vunpack.c.0.s8 %v2543
    %v2545 = vlaneseq
    %v2546 = vshrl.u32 %v2545, 7
    %v2547 = vsub.s32 %v2544, %v2546
    %v2548 = vrot.slane %v2534, %v2547
    %v2549 = vcombine.low %v2105, %v2287
    %v2550 = vcombine.high %v2105, %v2287
    %v2552 = vunpack.c.l.s4 1983009808
    %v2553 = vunpack.c.0.s8 %v2552
    %v2554 = vlaneseq
    %v2555 = vshrl.u32 %v2554, 7
    %v2556 = vsub.s32 %v2553, %v2555
    %v2557 = vrot.slane %v2549, %v2556
    %v2559 = vunpack.c.l.s4 1983009808
    %v2560 = vunpack.c.0.s8 %v2559
    %v2561 = vlaneseq
    %v2562 = vshrl.u32 %v2561, 7
    %v2563 = vsub.s32 %v2560, %v2562
    %v2564 = vrot.slane %v2550, %v2563
    %v2565 = vcombine.low %v2196, %v2378
    %v2566 = vcombine.high %v2196, %v2378
    %v2568 = vunpack.c.l.s4 1983009808
    %v2569 = vunpack.c.0.s8 %v2568
    %v2570 = vlaneseq
    %v2571 = vshrl.u32 %v2570, 7
    %v2572 = vsub.s32 %v2569, %v2571
    %v2573 = vrot.slane %v2565, %v2572
    %v2575 = vunpack.c.l.s4 1983009808
    %v2576 = vunpack.c.0.s8 %v2575
    %v2577 = vlaneseq
    %v2578 = vshrl.u32 %v2577, 7
    %v2579 = vsub.s32 %v2576, %v2578
    %v2580 = vrot.slane %v2566, %v2579
    %v2581 = vcombine.low %v2525, %v2541
    %v2582 = vcombine.high %v2525, %v2541
    %v2584 = vunpack.c.l.s4 1934713408
    %v2585 = vunpack.c.0.s8 %v2584
    %v2586 = vlaneseq
    %v2587 = vshrl.u32 %v2586, 7
    %v2588 = vsub.s32 %v2585, %v2587
    %v2589 = vrot.slane %v2581, %v2588
    %v2591 = vunpack.c.l.s4 1934713408
    %v2592 = vunpack.c.0.s8 %v2591
    %v2593 = vlaneseq
    %v2594 = vshrl.u32 %v2593, 7
    %v2595 = vsub.s32 %v2592, %v2594
    %v2596 = vrot.slane %v2582, %v2595
    %v2597 = vcombine.low %v2532, %v2548
    %v2598 = vcombine.high %v2532, %v2548
    %v2600 = vunpack.c.l.s4 1934713408
    %v2601 = vunpack.c.0.s8 %v2600
    %v2602 = vlaneseq
    %v2603 = vshrl.u32 %v2602, 7
    %v2604 = vsub.s32 %v2601, %v2603
    %v2605 = vrot.slane %v2597, %v2604
    %v2607 = vunpack.c.l.s4 1934713408
    %v2608 = vunpack.c.0.s8 %v2607
    %v2609 = vlaneseq
    %v2610 = vshrl.u32 %v2609, 7
    %v2611 = vsub.s32 %v2608, %v2610
    %v2612 = vrot.slane %v2598, %v2611
    %v2613 = vcombine.low %v2557, %v2573
    %v2614 = vcombine.high %v2557, %v2573
    %v2616 = vunpack.c.l.s4 1934713408
    %v2617 = vunpack.c.0.s8 %v2616
    %v2618 = vlaneseq
    %v2619 = vshrl.u32 %v2618, 7
    %v2620 = vsub.s32 %v2617, %v2619
    %v2621 = vrot.slane %v2613, %v2620
    %v2623 = vunpack.c.l.s4 1934713408
    %v2624 = vunpack.c.0.s8 %v2623
    %v2625 = vlaneseq
    %v2626 = vshrl.u32 %v2625, 7
    %v2627 = vsub.s32 %v2624, %v2626
    %v2628 = vrot.slane %v2614, %v2627
    %v2629 = vcombine.low %v2564, %v2580
    %v2630 = vcombine.high %v2564, %v2580
    %v2632 = vunpack.c.l.s4 1934713408
    %v2633 = vunpack.c.0.s8 %v2632
    %v2634 = vlaneseq
    %v2635 = vshrl.u32 %v2634, 7
    %v2636 = vsub.s32 %v2633, %v2635
    %v2637 = vrot.slane %v2629, %v2636
    %v2639 = vunpack.c.l.s4 1934713408
    %v2640 = vunpack.c.0.s8 %v2639
    %v2641 = vlaneseq
    %v2642 = vshrl.u32 %v2641, 7
    %v2643 = vsub.s32 %v2640, %v2642
    %v2644 = vrot.slane %v2630, %v2643
    %v2645 = vcombine.low %v2589, %v2621
    %v2646 = vcombine.high %v2589, %v2621
    %v2647 = vcombine.low %v2596, %v2628
    %v2648 = vcombine.high %v2596, %v2628
    %v2649 = vcombine.low %v2605, %v2637
    %v2650 = vcombine.high %v2605, %v2637
    %v2651 = vcombine.low %v2612, %v2644
    %v2652 = vcombine.high %v2612, %v2644
    %2654 = vrot.lane.b32.xlu0 %v2510, 4
    %v2655 = vpop.permute.xlu0 %2654
    %2658 = vrot.lane.b32.xlu0 %v2511, 8
    %v2659 = vpop.permute.xlu0 %2658
    %2662 = vrot.lane.b32.xlu0 %v2512, 12
    %v2663 = vpop.permute.xlu0 %2662
    %2666 = vrot.lane.b32.xlu0 %v2513, 16
    %v2667 = vpop.permute.xlu0 %2666
    %2670 = vrot.lane.b32.xlu0 %v2514, 20
    %v2671 = vpop.permute.xlu0 %2670
    %2674 = vrot.lane.b32.xlu0 %v2515, 24
    %v2675 = vpop.permute.xlu0 %2674
    %2678 = vrot.lane.b32.xlu0 %v2516, 28
    %v2679 = vpop.permute.xlu0 %2678
    %2682 = vrot.lane.b32.xlu0 %v2645, 32
    %v2683 = vpop.permute.xlu0 %2682
    %2686 = vrot.lane.b32.xlu0 %v2646, 36
    %v2687 = vpop.permute.xlu0 %2686
    %2690 = vrot.lane.b32.xlu0 %v2647, 40
    %v2691 = vpop.permute.xlu0 %2690
    %2694 = vrot.lane.b32.xlu0 %v2648, 44
    %v2695 = vpop.permute.xlu0 %2694
    %2698 = vrot.lane.b32.xlu0 %v2649, 48
    %v2699 = vpop.permute.xlu0 %2698
    %2702 = vrot.lane.b32.xlu0 %v2650, 52
    %v2703 = vpop.permute.xlu0 %2702
    %2706 = vrot.lane.b32.xlu0 %v2651, 56
    %v2707 = vpop.permute.xlu0 %2706
    %2710 = vrot.lane.b32.xlu0 %v2652, 60
    %v2711 = vpop.permute.xlu0 %2710
    %vm2713 = vcmask 31744
    %v2714 = vsel %vm2713, %v2509, %v2655
    %vm2715 = vcmask 64512
    %v2716 = vsel %vm2715, %v2714, %v2659
    %vm2717 = vcmask 97280
    %v2718 = vsel %vm2717, %v2716, %v2663
    %v2719 = vsel %vm74, %v2718, %v2667
    %vm2720 = vcmask 162816
    %v2721 = vsel %vm2720, %v2719, %v2671
    %vm2722 = vcmask 195584
    %v2723 = vsel %vm2722, %v2721, %v2675
    %vm2724 = vcmask 228352
    %v2725 = vsel %vm2724, %v2723, %v2679
    %vm2726 = vcmask 261120
    %v2727 = vsel %vm2726, %v2725, %v2683
    %vm2728 = vcmask 293888
    %v2729 = vsel %vm2728, %v2727, %v2687
    %vm2730 = vcmask 326656
    %v2731 = vsel %vm2730, %v2729, %v2691
    %vm2732 = vcmask 359424
    %v2733 = vsel %vm2732, %v2731, %v2695
    %vm2734 = vcmask 392192
    %v2735 = vsel %vm2734, %v2733, %v2699
    %vm2736 = vcmask 424960
    %v2737 = vsel %vm2736, %v2735, %v2703
    %vm2738 = vcmask 457728
    %v2739 = vsel %vm2738, %v2737, %v2707
    %vm2740 = vcmask 490496
    %v2741 = vsel %vm2740, %v2739, %v2711
    %v2742 = vld [vmem:[#allocation7] sm:$0xff]
    %v2743 = vld [vmem:[#allocation7 + $0x8] sm:$0xff]
    %v2744 = vld [vmem:[#allocation7 + $0x10] sm:$0xff]
    %v2745 = vld [vmem:[#allocation7 + $0x18] sm:$0xff]
    %v2746 = vld [vmem:[#allocation7 + $0x20] sm:$0xff]
    %v2747 = vld [vmem:[#allocation7 + $0x28] sm:$0xff]
    %v2748 = vld [vmem:[#allocation7 + $0x30] sm:$0xff]
    %v2749 = vld [vmem:[#allocation7 + $0x38] sm:$0xff]
    %v2750 = vld [vmem:[#allocation7 + $0x40] sm:$0xff]
    %v2751 = vld [vmem:[#allocation7 + $0x48] sm:$0xff]
    %v2752 = vld [vmem:[#allocation7 + $0x50] sm:$0xff]
    %v2753 = vld [vmem:[#allocation7 + $0x58] sm:$0xff]
    %v2754 = vld [vmem:[#allocation7 + $0x60] sm:$0xff]
    %v2755 = vld [vmem:[#allocation7 + $0x68] sm:$0xff]
    %v2756 = vld [vmem:[#allocation7 + $0x70] sm:$0xff]
    %v2757 = vld [vmem:[#allocation7 + $0x78] sm:$0xff]
    %vm2758 = vcmask 523264
    %v2760 = vsel %vm2758, %v2741, 0
    %2762 = vmatprep.subr.mxu0 0.0
    %2763 = vmatpush1.msra.mxu0 0.0
    %2764 = vmatprep.subr.mxu0 0.0
    %2765 = vmatpush1.msra.mxu0 0.0
    %2766 = vmatprep.subr.mxu0 0.0
    %2767 = vmatpush1.msra.mxu0 0.0
    %2768 = vmatprep.subr.mxu0 0.0
    %2769 = vmatpush1.msra.mxu0 0.0
    %2770 = vmatprep.subr.mxu0 0.0
    %2771 = vmatpush1.msra.mxu0 0.0
    %2772 = vmatprep.subr.mxu0 0.0
    %2773 = vmatpush1.msra.mxu0 0.0
    %2774 = vmatprep.subr.mxu0 0.0
    %2775 = vmatpush1.msra.mxu0 0.0
    %2776 = vmatprep.subr.mxu0 0.0
    %2777 = vmatpush1.msra.mxu0 0.0
    %2778 = vmatprep.subr.mxu0 %v2757
    %2779 = vmatpush1.msra.mxu0 %v2756
    %2780 = vmatprep.subr.mxu0 %v2755
    %2781 = vmatpush1.msra.mxu0 %v2754
    %2782 = vmatprep.subr.mxu0 %v2753
    %2783 = vmatpush1.msra.mxu0 %v2752
    %2784 = vmatprep.subr.mxu0 %v2751
    %2785 = vmatpush1.msra.mxu0 %v2750
    %2786 = vmatprep.subr.mxu0 %v2749
    %2787 = vmatpush1.msra.mxu0 %v2748
    %2788 = vmatprep.subr.mxu0 %v2747
    %2789 = vmatpush1.msra.mxu0 %v2746
    %2790 = vmatprep.subr.mxu0 %v2745
    %2791 = vmatpush1.msra.mxu0 %v2744
    %2792 = vmatprep.subr.mxu0 %v2743
    %2793 = vmatpush1.msra.mxu0 %v2742
    %2794 = vmatprep.subr.mxu0 0.0
    %2795 = vmatpush2.msra.mxu0 0.0
    %2796 = vmatprep.subr.mxu0 0.0
    %2797 = vmatpush2.msra.mxu0 0.0
    %2798 = vmatprep.subr.mxu0 0.0
    %2799 = vmatpush2.msra.mxu0 0.0
    %2800 = vmatprep.subr.mxu0 0.0
    %2801 = vmatpush2.msra.mxu0 0.0
    %2802 = vmatprep.subr.mxu0 0.0
    %2803 = vmatpush2.msra.mxu0 0.0
    %2804 = vmatprep.subr.mxu0 0.0
    %2805 = vmatpush2.msra.mxu0 0.0
    %2806 = vmatprep.subr.mxu0 0.0
    %2807 = vmatpush2.msra.mxu0 0.0
    %2808 = vmatprep.subr.mxu0 0.0
    %2809 = vmatpush2.msra.mxu0 0.0
    %2810 = vmatprep.subr.mxu0 0.0
    %2811 = vmatpush2.msra.mxu0 0.0
    %2812 = vmatprep.subr.mxu0 0.0
    %2813 = vmatpush2.msra.mxu0 0.0
    %2814 = vmatprep.subr.mxu0 0.0
    %2815 = vmatpush2.msra.mxu0 0.0
    %2816 = vmatprep.subr.mxu0 0.0
    %2817 = vmatpush2.msra.mxu0 0.0
    %2818 = vmatprep.subr.mxu0 0.0
    %2819 = vmatpush2.msra.mxu0 0.0
    %2820 = vmatprep.subr.mxu0 0.0
    %2821 = vmatpush2.msra.mxu0 0.0
    %2822 = vmatprep.subr.mxu0 0.0
    %2823 = vmatpush2.msra.mxu0 0.0
    %2824 = vmatprep.subr.mxu0 0.0
    %2825 = vmatpush2.msra.mxu0 0.0
    %2826 = vmatprep.mubr.f32.mxu0 0.0
    %2827 = vmatmul.mubr.f32.gmra.mxu0 %v2760
    %v2828 = vpop.f32.mrf.mxu0
    %v2829 = vadd.f32 0.0, %v2828
    %v2830 = vpop.f32.mrf.mxu0
    %v2831 = vadd.f32 0.0, %v2830
    %2832 = vdwg.mxu0
    %2833 = vst [vmem:[#allocation8] sm:$0xff] %v2829
    %2834 = vst [vmem:[#allocation8 + $0x8] sm:$0xff] %v2831
    // Predicated region
    $region26: #{tpu_custom_call.1} parent=1 // pred_check
      _
    $region27: #{tpu_custom_call.1} parent=1 // pred_check_branch
      %2836 = sbr.rel (0) target = $region29
    $region28: #{tpu_custom_call.1} parent=1 // pred_region
      %s2838 = ssub.s32 256, 256
      %2839 = vsyncadd [#allocation4], %s2838
      %s2841 = sshll.u32 [#allocation8], 4
      %s2842 = int_to_ptr.vmem [resolvable:$true] %s2841
      %2844 = dma.vmem_to_hbm [thread:$0]  %s2842, 256, %s3, [#allocation4]
    $region29: #{tpu_custom_call.1} parent=1 // pred_fallthru
      _
    // Predicated region
    $region30: #{tpu_custom_call.1} parent=1 // pred_check
      _
    $region31: #{tpu_custom_call.1} parent=1 // pred_check_branch
      %2846 = sbr.rel (0) target = $region33
    $region32: #{tpu_custom_call.1} parent=1 // pred_region
      %2847 = dma.done [#allocation4], 256
    $region33: #{tpu_custom_call.1} parent=1 // pred_fallthru
      _
    %2848 = vsyncpa [#allocation3], 1
    %2849 = vsyncpa [#allocation6], 1
    %2850 = vsyncpa [#allocation4], 1

</llo_original>
